<compile_context>
chip_gen: v6e
topology: v6e:2x2x1
jax: 0.10.0
libtpu: 0.0.40
codegen_flags: <defaults>
</compile_context>

<pallas_src>
import functools

import jax
import jax.numpy as jnp
from jax.experimental import pallas as pl
from jax.experimental.pallas import tpu as pltpu


def _round_up(n, m):
    return ((n + m - 1) // m) * m


# ---------------------------------------------------------------------------
# Sweep A: conv1 + per-sequence BN1 partial statistics
# ---------------------------------------------------------------------------
def _conv1_kernel(x_ref, w_ref, h_ref, s_ref, *, seq_len: int):
    # x_ref: (1, L+2, Cp) f32, halo rows are zero
    # w_ref: (3, Cp, Pp)  compute dtype (per-tap packed conv1 weight)
    # h_ref: (1, L+2, Pp) compute dtype (conv1 output, halo rows kept zero)
    # s_ref: (1, 2, Pp)   f32 (row 0 = sum, row 1 = sum of squares)
    L = seq_len
    pp = w_ref.shape[2]
    cdt = w_ref.dtype

    # Three accumulated MXU dots against static weight slices (no concatenate).
    x0 = x_ref[0, 0:L, :].astype(cdt)
    x1 = x_ref[0, 1:L + 1, :].astype(cdt)
    x2 = x_ref[0, 2:L + 2, :].astype(cdt)
    h = jnp.dot(x0, w_ref[0], preferred_element_type=jnp.float32)
    h += jnp.dot(x1, w_ref[1], preferred_element_type=jnp.float32)
    h += jnp.dot(x2, w_ref[2], preferred_element_type=jnp.float32)

    # Per-sequence partial BN statistics (reduced across the batch in the wrapper).
    s_ref[0, 0:1, :] = jnp.sum(h, axis=0, keepdims=True)
    s_ref[0, 1:2, :] = jnp.sum(h * h, axis=0, keepdims=True)

    # Store conv output; keep the halo rows zero for sweep B's conv taps.
    zero_row = jnp.zeros((1, pp), dtype=h_ref.dtype)
    h_ref[0, 0:1, :] = zero_row
    h_ref[0, 1:L + 1, :] = h.astype(h_ref.dtype)
    h_ref[0, L + 1:L + 2, :] = zero_row


# ---------------------------------------------------------------------------
# Sweep B: BN1 apply + ReLU + conv2 + per-sequence BN2 partial statistics
# ---------------------------------------------------------------------------
def _bn_relu_conv2_kernel(h1_ref, aff_ref, w_ref, h2_ref, s_ref, *, seq_len: int):
    # h1_ref: (1, L+2, Pp) compute dtype   aff_ref: (2, Pp) f32 [scale; shift]
    # w_ref : (3, Pp, Pp)  compute dtype
    # h2_ref: (1, L, Pp)   compute dtype   s_ref : (1, 2, Pp) f32
    L = seq_len
    Lp = h1_ref.shape[1]
    cdt = w_ref.dtype

    sc = aff_ref[0:1, :]
    sh = aff_ref[1:2, :]
    h1 = h1_ref[0].astype(jnp.float32)                    # (L+2, Pp)
    a = jnp.maximum(h1 * sc + sh, 0.0)
    # BN shift is nonzero on the (stored-zero) halo rows; zero them so conv2's
    # out-of-sequence taps contribute nothing.  Tiny (L+2, 1) per-tile mask.
    rows = jax.lax.broadcasted_iota(jnp.int32, (Lp, 1), 0)
    a = jnp.where((rows >= 1) & (rows <= L), a, 0.0)

    a0 = a[0:L, :].astype(cdt)
    a1 = a[1:L + 1, :].astype(cdt)
    a2 = a[2:L + 2, :].astype(cdt)
    h2 = jnp.dot(a0, w_ref[0], preferred_element_type=jnp.float32)
    h2 += jnp.dot(a1, w_ref[1], preferred_element_type=jnp.float32)
    h2 += jnp.dot(a2, w_ref[2], preferred_element_type=jnp.float32)

    s_ref[0, 0:1, :] = jnp.sum(h2, axis=0, keepdims=True)
    s_ref[0, 1:2, :] = jnp.sum(h2 * h2, axis=0, keepdims=True)
    h2_ref[0] = h2.astype(h2_ref.dtype)


# ---------------------------------------------------------------------------
# Sweep C: BN2 apply + residual add
# ---------------------------------------------------------------------------
def _bn2_residual_kernel(h2_ref, x_ref, aff_ref, o_ref, *, seq_len: int):
    # h2_ref: (1, L, Pp)    x_ref: (1, L+2, Cp) f32 (residual; Cp == Pp)
    # aff_ref: (2, Pp) f32  o_ref: (1, L, Pp) f32
    L = seq_len
    sc = aff_ref[0:1, :]
    sh = aff_ref[1:2, :]
    h2 = h2_ref[0].astype(jnp.float32)
    xi = x_ref[0, 1:L + 1, :]                             # interior rows
    o_ref[0] = (h2 * sc + sh + xi).astype(o_ref.dtype)


def _bn_affine(stats, gamma_p, beta_p, count, eps):
    """Reduce per-sequence partial sums -> folded per-channel scale/shift (2, Pp)."""
    s = jnp.sum(stats, axis=0)                            # (2, Pp)
    mean = s[0] / count
    # Single-pass biased variance, clamped at 0 to avoid rsqrt(negative) from
    # catastrophic cancellation.
    var = jnp.maximum(s[1] / count - mean * mean, 0.0)
    scale = gamma_p * jax.lax.rsqrt(var + eps)
    shift = beta_p - mean * scale
    return jnp.stack([scale, shift], axis=0).astype(jnp.float32)


@functools.partial(jax.jit, static_argnames=("eps", "compute_dtype"))
def basic_block(x_ncl, w1, g1, b1, w2, g2, b2, *, eps=1e-5,
                compute_dtype=jnp.bfloat16):
    """x_ncl: (N, C, L) float32.  w1, w2: PyTorch Conv1d weights (out, in, 3)."""
    N, C, L = x_ncl.shape
    P = w1.shape[0]
    assert P == C, "residual add requires inplanes == planes"

    cp = _round_up(C, 128)
    pp = _round_up(P, 128)
    Lp = L + 2

    # (N, C, L) -> (N, L+2, Cp): channels-last, one zero halo row per sequence end,
    # channels zero-padded to full lane width.  Kept f32 so the residual is exact.
    xpad = jnp.transpose(x_ncl, (0, 2, 1)).astype(jnp.float32)
    xpad = jnp.pad(xpad, ((0, 0), (1, 1), (0, cp - C)))

    def pack_w(w, cin, cin_p, cout, cout_p):
        # (out, in, 3) -> (3, in, out), zero-pad channels, pre-cast for the MXU.
        wk = jnp.transpose(w, (2, 1, 0))
        wk = jnp.pad(wk, ((0, 0), (0, cin_p - cin), (0, cout_p - cout)))
        return wk.astype(compute_dtype)

    w1p = pack_w(w1, C, cp, P, pp)
    w2p = pack_w(w2, P, pp, P, pp)
    g1p = jnp.pad(g1.astype(jnp.float32), (0, pp - P))
    b1p = jnp.pad(b1.astype(jnp.float32), (0, pp - P))
    g2p = jnp.pad(g2.astype(jnp.float32), (0, pp - P))
    b2p = jnp.pad(b2.astype(jnp.float32), (0, pp - P))

    parallel = pltpu.CompilerParams(dimension_semantics=("parallel",))

    # ---- Sweep A ----
    h1, s1 = pl.pallas_call(
        functools.partial(_conv1_kernel, seq_len=L),
        grid=(N,),
        in_specs=[
            pl.BlockSpec((1, Lp, cp), lambda i: (i, 0, 0)),
            pl.BlockSpec((3, cp, pp), lambda i: (0, 0, 0)),
        ],
        out_specs=(
            pl.BlockSpec((1, Lp, pp), lambda i: (i, 0, 0)),
            pl.BlockSpec((1, 2, pp), lambda i: (i, 0, 0)),
        ),
        out_shape=(
            jax.ShapeDtypeStruct((N, Lp, pp), compute_dtype),
            jax.ShapeDtypeStruct((N, 2, pp), jnp.float32),
        ),
        compiler_params=parallel,
    )(xpad, w1p)

    aff1 = _bn_affine(s1, g1p, b1p, N * L, eps)

    # ---- Sweep B ----
    h2, s2 = pl.pallas_call(
        functools.partial(_bn_relu_conv2_kernel, seq_len=L),
        grid=(N,),
        in_specs=[
            pl.BlockSpec((1, Lp, pp), lambda i: (i, 0, 0)),
            pl.BlockSpec((2, pp), lambda i: (0, 0)),
            pl.BlockSpec((3, pp, pp), lambda i: (0, 0, 0)),
        ],
        out_specs=(
            pl.BlockSpec((1, L, pp), lambda i: (i, 0, 0)),
            pl.BlockSpec((1, 2, pp), lambda i: (i, 0, 0)),
        ),
        out_shape=(
            jax.ShapeDtypeStruct((N, L, pp), compute_dtype),
            jax.ShapeDtypeStruct((N, 2, pp), jnp.float32),
        ),
        compiler_params=parallel,
    )(h1, aff1, w2p)

    aff2 = _bn_affine(s2, g2p, b2p, N * L, eps)

    # ---- Sweep C ----
    out = pl.pallas_call(
        functools.partial(_bn2_residual_kernel, seq_len=L),
        grid=(N,),
        in_specs=[
            pl.BlockSpec((1, L, pp), lambda i: (i, 0, 0)),
            pl.BlockSpec((1, Lp, cp), lambda i: (i, 0, 0)),
            pl.BlockSpec((2, pp), lambda i: (0, 0)),
        ],
        out_specs=pl.BlockSpec((1, L, pp), lambda i: (i, 0, 0)),
        out_shape=jax.ShapeDtypeStruct((N, L, pp), jnp.float32),
        compiler_params=parallel,
    )(h2, xpad, aff2)

    # (N, L, Pp) -> (N, P, L), dropping channel padding.
    return jnp.transpose(out[:, :, :P], (0, 2, 1)).astype(x_ncl.dtype)


def reference(x, w1, g1, b1, w2, g2, b2, eps=1e-5):
    """Pure-JAX reference mirroring the PyTorch forward (training-mode BN)."""
    dn = jax.lax.conv_dimension_numbers(x.shape, w1.shape, ('NCH', 'OIH', 'NCH'))

    def conv(t, w):
        return jax.lax.conv_general_dilated(
            t, w, window_strides=(1,), padding=((1, 1),), dimension_numbers=dn)

    def bn(t, g, b):
        m = jnp.mean(t, axis=(0, 2), keepdims=True)
        v = jnp.mean((t - m) ** 2, axis=(0, 2), keepdims=True)
        return (t - m) / jnp.sqrt(v + eps) * g.reshape(1, -1, 1) + b.reshape(1, -1, 1)

    h = jnp.maximum(bn(conv(x, w1), g1, b1), 0.0)
    h = bn(conv(h, w2), g2, b2)
    return h + x


if __name__ == "__main__":
    N, C, L = 2, 4, 16          # batch, channels (inplanes == planes), length
    key = jax.random.PRNGKey(0)
    kx, k1, k2, kg1, kb1, kg2, kb2 = jax.random.split(key, 7)

    x = jax.random.normal(kx, (N, C, L), dtype=jnp.float32)
    w1 = 0.2 * jax.random.normal(k1, (C, C, 3), dtype=jnp.float32)   # conv1 weight
    w2 = 0.2 * jax.random.normal(k2, (C, C, 3), dtype=jnp.float32)   # conv2 weight
    g1 = 1.0 + 0.1 * jax.random.normal(kg1, (C,), dtype=jnp.float32)
    b1 = 0.1 * jax.random.normal(kb1, (C,), dtype=jnp.float32)
    g2 = 1.0 + 0.1 * jax.random.normal(kg2, (C,), dtype=jnp.float32)
    b2 = 0.1 * jax.random.normal(kb2, (C,), dtype=jnp.float32)

    ref = reference(x, w1, g1, b1, w2, g2, b2)

    # Exact-precision path (f32 matmul operands): tight tolerance.
    out_f32 = jax.block_until_ready(
        basic_block(x, w1, g1, b1, w2, g2, b2, compute_dtype=jnp.float32))
    assert out_f32.shape == (N, C, L)
    err_f32 = float(jnp.max(jnp.abs(out_f32 - ref)))
    assert jnp.allclose(out_f32, ref, atol=1e-3, rtol=1e-3), err_f32

    # Default fast path (bf16 MXU operands, f32 accumulation): bf16-level tolerance.
    out_bf16 = jax.block_until_ready(basic_block(x, w1, g1, b1, w2, g2, b2))
    assert out_bf16.shape == (N, C, L)
    err_bf16 = float(jnp.max(jnp.abs(out_bf16 - ref)))
    assert jnp.allclose(out_bf16, ref, atol=5e-2, rtol=5e-2), err_bf16

    print("KERNEL_OK")
</pallas_src>

<mosaic_0001>
module attributes {stable_mosaic.version = 11 : i64} {
  func.func @_conv1_kernel(%arg0: i32, %arg1: memref<1x18x128xf32, #tpu.memory_space<vmem>>, %arg2: memref<3x128x128xf32, #tpu.memory_space<vmem>>, %arg3: memref<1x18x128xf32, #tpu.memory_space<vmem>>, %arg4: memref<1x2x128xf32, #tpu.memory_space<vmem>>) attributes {dimension_semantics = [#tpu.dimension_semantics<parallel>], iteration_bounds = array<i64: 2>, scalar_prefetch = 0 : i64, scratch_operands = 0 : i64, tpu.core_type = #tpu.core_type<tc>, window_params = [{transform_indices = @transform_0, window_bounds = array<i64: 1, 18, 128>}, {pipeline_mode = #tpu.pipeline_mode<synchronous>, transform_indices = @transform_1, window_bounds = array<i64: 3, 128, 128>}, {transform_indices = @transform_2, window_bounds = array<i64: 1, 18, 128>}, {transform_indices = @transform_3, window_bounds = array<i64: 1, 2, 128>}]} {
    %c0 = arith.constant 0 : index
    %c0_0 = arith.constant 0 : index
    %c0_1 = arith.constant 0 : index
    %0 = vector.load %arg1[%c0, %c0_0, %c0_1] : memref<1x18x128xf32, #tpu.memory_space<vmem>>, vector<1x16x128xf32>
    %1 = vector.shape_cast %0 : vector<1x16x128xf32> to vector<16x128xf32>
    %c0_2 = arith.constant 0 : index
    %c1 = arith.constant 1 : index
    %c0_3 = arith.constant 0 : index
    %2 = vector.load %arg1[%c0_2, %c1, %c0_3] : memref<1x18x128xf32, #tpu.memory_space<vmem>>, vector<1x16x128xf32>
    %3 = vector.shape_cast %2 : vector<1x16x128xf32> to vector<16x128xf32>
    %c0_4 = arith.constant 0 : index
    %c2 = arith.constant 2 : index
    %c0_5 = arith.constant 0 : index
    %4 = vector.load %arg1[%c0_4, %c2, %c0_5] : memref<1x18x128xf32, #tpu.memory_space<vmem>>, vector<1x16x128xf32>
    %5 = vector.shape_cast %4 : vector<1x16x128xf32> to vector<16x128xf32>
    %c0_6 = arith.constant 0 : index
    %c0_7 = arith.constant 0 : index
    %c0_8 = arith.constant 0 : index
    %6 = vector.load %arg2[%c0_6, %c0_7, %c0_8] : memref<3x128x128xf32, #tpu.memory_space<vmem>>, vector<1x128x128xf32>
    %7 = vector.shape_cast %6 : vector<1x128x128xf32> to vector<128x128xf32>
    %cst = arith.constant dense<0.000000e+00> : vector<16x128xf32>
    %8 = tpu.matmul %1, %7, %cst {dimension_numbers = #tpu.dot_dimension_numbers<[1], [0], [0], [1], [0, 0, 1, 1], [], []>} : vector<16x128xf32>, vector<128x128xf32>, vector<16x128xf32> -> vector<16x128xf32>
    %c1_9 = arith.constant 1 : index
    %c0_10 = arith.constant 0 : index
    %c0_11 = arith.constant 0 : index
    %9 = vector.load %arg2[%c1_9, %c0_10, %c0_11] : memref<3x128x128xf32, #tpu.memory_space<vmem>>, vector<1x128x128xf32>
    %10 = vector.shape_cast %9 : vector<1x128x128xf32> to vector<128x128xf32>
    %cst_12 = arith.constant dense<0.000000e+00> : vector<16x128xf32>
    %11 = tpu.matmul %3, %10, %cst_12 {dimension_numbers = #tpu.dot_dimension_numbers<[1], [0], [0], [1], [0, 0, 1, 1], [], []>} : vector<16x128xf32>, vector<128x128xf32>, vector<16x128xf32> -> vector<16x128xf32>
    %12 = arith.addf %8, %11 : vector<16x128xf32>
    %c2_13 = arith.constant 2 : index
    %c0_14 = arith.constant 0 : index
    %c0_15 = arith.constant 0 : index
    %13 = vector.load %arg2[%c2_13, %c0_14, %c0_15] : memref<3x128x128xf32, #tpu.memory_space<vmem>>, vector<1x128x128xf32>
    %14 = vector.shape_cast %13 : vector<1x128x128xf32> to vector<128x128xf32>
    %cst_16 = arith.constant dense<0.000000e+00> : vector<16x128xf32>
    %15 = tpu.matmul %5, %14, %cst_16 {dimension_numbers = #tpu.dot_dimension_numbers<[1], [0], [0], [1], [0, 0, 1, 1], [], []>} : vector<16x128xf32>, vector<128x128xf32>, vector<16x128xf32> -> vector<16x128xf32>
    %16 = arith.addf %12, %15 : vector<16x128xf32>
    %cst_17 = arith.constant dense<0.000000e+00> : vector<128xf32>
    %17 = vector.multi_reduction <add>, %16, %cst_17 [0] : vector<16x128xf32> to vector<128xf32>
    %18 = vector.shape_cast %17 : vector<128xf32> to vector<1x128xf32>
    %c0_18 = arith.constant 0 : index
    %c0_19 = arith.constant 0 : index
    %c0_20 = arith.constant 0 : index
    %19 = vector.load %arg4[%c0_18, %c0_19, %c0_20] : memref<1x2x128xf32, #tpu.memory_space<vmem>>, vector<1x1x128xf32>
    %20 = vector.shape_cast %19 : vector<1x1x128xf32> to vector<1x128xf32>
    %21 = vector.shape_cast %18 : vector<1x128xf32> to vector<1x1x128xf32>
    tpu.vector_store %arg4[%c0_18, %c0_19, %c0_20], %21 {strides = array<i32>} : memref<1x2x128xf32, #tpu.memory_space<vmem>>, vector<1x1x128xf32>,
    %22 = arith.mulf %16, %16 : vector<16x128xf32>
    %cst_21 = arith.constant dense<0.000000e+00> : vector<128xf32>
    %23 = vector.multi_reduction <add>, %22, %cst_21 [0] : vector<16x128xf32> to vector<128xf32>
    %24 = vector.shape_cast %23 : vector<128xf32> to vector<1x128xf32>
    %c0_22 = arith.constant 0 : index
    %c1_23 = arith.constant 1 : index
    %c0_24 = arith.constant 0 : index
    %25 = vector.load %arg4[%c0_22, %c1_23, %c0_24] : memref<1x2x128xf32, #tpu.memory_space<vmem>>, vector<1x1x128xf32>
    %26 = vector.shape_cast %25 : vector<1x1x128xf32> to vector<1x128xf32>
    %27 = vector.shape_cast %24 : vector<1x128xf32> to vector<1x1x128xf32>
    tpu.vector_store %arg4[%c0_22, %c1_23, %c0_24], %27 {strides = array<i32>} : memref<1x2x128xf32, #tpu.memory_space<vmem>>, vector<1x1x128xf32>,
    %cst_25 = arith.constant 0.000000e+00 : f32
    %28 = vector.broadcast %cst_25 : f32 to vector<1x128xf32>
    %c0_26 = arith.constant 0 : index
    %c0_27 = arith.constant 0 : index
    %c0_28 = arith.constant 0 : index
    %29 = vector.load %arg3[%c0_26, %c0_27, %c0_28] : memref<1x18x128xf32, #tpu.memory_space<vmem>>, vector<1x1x128xf32>
    %30 = vector.shape_cast %29 : vector<1x1x128xf32> to vector<1x128xf32>
    %31 = vector.shape_cast %28 : vector<1x128xf32> to vector<1x1x128xf32>
    tpu.vector_store %arg3[%c0_26, %c0_27, %c0_28], %31 {strides = array<i32>} : memref<1x18x128xf32, #tpu.memory_space<vmem>>, vector<1x1x128xf32>,
    %c0_29 = arith.constant 0 : index
    %c1_30 = arith.constant 1 : index
    %c0_31 = arith.constant 0 : index
    %32 = vector.load %arg3[%c0_29, %c1_30, %c0_31] : memref<1x18x128xf32, #tpu.memory_space<vmem>>, vector<1x16x128xf32>
    %33 = vector.shape_cast %32 : vector<1x16x128xf32> to vector<16x128xf32>
    %34 = vector.shape_cast %16 : vector<16x128xf32> to vector<1x16x128xf32>
    tpu.vector_store %arg3[%c0_29, %c1_30, %c0_31], %34 {strides = array<i32>} : memref<1x18x128xf32, #tpu.memory_space<vmem>>, vector<1x16x128xf32>,
    %c0_32 = arith.constant 0 : index
    %c17 = arith.constant 17 : index
    %c0_33 = arith.constant 0 : index
    %35 = vector.load %arg3[%c0_32, %c17, %c0_33] : memref<1x18x128xf32, #tpu.memory_space<vmem>>, vector<1x1x128xf32>
    %36 = vector.shape_cast %35 : vector<1x1x128xf32> to vector<1x128xf32>
    %37 = vector.shape_cast %28 : vector<1x128xf32> to vector<1x1x128xf32>
    tpu.vector_store %arg3[%c0_32, %c17, %c0_33], %37 {strides = array<i32>} : memref<1x18x128xf32, #tpu.memory_space<vmem>>, vector<1x1x128xf32>,
    return
  }
  func.func @transform_0(%arg0: i32) -> (i32, i32, i32) {
    %c0_i32 = arith.constant 0 : i32
    %c0_i32_0 = arith.constant 0 : i32
    %c0_i32_1 = arith.constant 0 : i32
    return %arg0, %c0_i32, %c0_i32_0 : i32, i32, i32
  }
  func.func @transform_1(%arg0: i32) -> (i32, i32, i32) {
    %c0_i32 = arith.constant 0 : i32
    %c0_i32_0 = arith.constant 0 : i32
    %c0_i32_1 = arith.constant 0 : i32
    %c0_i32_2 = arith.constant 0 : i32
    return %c0_i32, %c0_i32_0, %c0_i32_1 : i32, i32, i32
  }
  func.func @transform_2(%arg0: i32) -> (i32, i32, i32) {
    %c0_i32 = arith.constant 0 : i32
    %c0_i32_0 = arith.constant 0 : i32
    %c0_i32_1 = arith.constant 0 : i32
    return %arg0, %c0_i32, %c0_i32_0 : i32, i32, i32
  }
  func.func @transform_3(%arg0: i32) -> (i32, i32, i32) {
    %c0_i32 = arith.constant 0 : i32
    %c0_i32_0 = arith.constant 0 : i32
    %c0_i32_1 = arith.constant 0 : i32
    return %arg0, %c0_i32, %c0_i32_0 : i32, i32, i32
  }
}

module attributes {stable_mosaic.version = 11 : i64} {
  func.func @_bn_relu_conv2_kernel(%arg0: i32, %arg1: memref<1x18x128xf32, #tpu.memory_space<vmem>>, %arg2: memref<2x128xf32, #tpu.memory_space<vmem>>, %arg3: memref<3x128x128xf32, #tpu.memory_space<vmem>>, %arg4: memref<1x16x128xf32, #tpu.memory_space<vmem>>, %arg5: memref<1x2x128xf32, #tpu.memory_space<vmem>>) attributes {dimension_semantics = [#tpu.dimension_semantics<parallel>], iteration_bounds = array<i64: 2>, scalar_prefetch = 0 : i64, scratch_operands = 0 : i64, tpu.core_type = #tpu.core_type<tc>, window_params = [{transform_indices = @transform_0, window_bounds = array<i64: 1, 18, 128>}, {pipeline_mode = #tpu.pipeline_mode<synchronous>, transform_indices = @transform_1, window_bounds = array<i64: 2, 128>}, {pipeline_mode = #tpu.pipeline_mode<synchronous>, transform_indices = @transform_2, window_bounds = array<i64: 3, 128, 128>}, {transform_indices = @transform_3, window_bounds = array<i64: 1, 16, 128>}, {transform_indices = @transform_4, window_bounds = array<i64: 1, 2, 128>}]} {
    %c0 = arith.constant 0 : index
    %c0_0 = arith.constant 0 : index
    %0 = vector.load %arg2[%c0, %c0_0] : memref<2x128xf32, #tpu.memory_space<vmem>>, vector<1x128xf32>
    %c1 = arith.constant 1 : index
    %c0_1 = arith.constant 0 : index
    %1 = vector.load %arg2[%c1, %c0_1] : memref<2x128xf32, #tpu.memory_space<vmem>>, vector<1x128xf32>
    %c0_2 = arith.constant 0 : index
    %c0_3 = arith.constant 0 : index
    %c0_4 = arith.constant 0 : index
    %2 = vector.load %arg1[%c0_2, %c0_3, %c0_4] : memref<1x18x128xf32, #tpu.memory_space<vmem>>, vector<1x18x128xf32>
    %3 = vector.shape_cast %2 : vector<1x18x128xf32> to vector<18x128xf32>
    %4 = vector.broadcast %0 : vector<1x128xf32> to vector<18x128xf32>
    %5 = arith.mulf %3, %4 : vector<18x128xf32>
    %6 = vector.broadcast %1 : vector<1x128xf32> to vector<18x128xf32>
    %7 = arith.addf %5, %6 : vector<18x128xf32>
    %cst = arith.constant 0.000000e+00 : f32
    %8 = vector.broadcast %cst : f32 to vector<18x128xf32>
    %9 = arith.maximumf %7, %8 : vector<18x128xf32>
    %10 = tpu.iota {dimensions = array<i32: 0>} : vector<18x1xi32>
    %c1_i32 = arith.constant 1 : i32
    %11 = vector.broadcast %c1_i32 : i32 to vector<18x1xi32>
    %12 = arith.cmpi sge, %10, %11 : vector<18x1xi32>
    %c16_i32 = arith.constant 16 : i32
    %13 = vector.broadcast %c16_i32 : i32 to vector<18x1xi32>
    %14 = arith.cmpi sle, %10, %13 : vector<18x1xi32>
    %15 = arith.andi %12, %14 : vector<18x1xi1>
    %cst_5 = arith.constant 0.000000e+00 : f32
    %16 = vector.shape_cast %15 : vector<18x1xi1> to vector<18x1xi1>
    %17 = vector.broadcast %16 : vector<18x1xi1> to vector<18x128xi1>
    %18 = vector.broadcast %cst_5 : f32 to vector<18x128xf32>
    %19 = arith.select %17, %9, %18 : vector<18x128xi1>, vector<18x128xf32>
    %20 = vector.extract_strided_slice %19 {offsets = [0, 0], sizes = [16, 128], strides = [1, 1]} : vector<18x128xf32> to vector<16x128xf32>
    %21 = vector.extract_strided_slice %19 {offsets = [1, 0], sizes = [16, 128], strides = [1, 1]} : vector<18x128xf32> to vector<16x128xf32>
    %22 = vector.extract_strided_slice %19 {offsets = [2, 0], sizes = [16, 128], strides = [1, 1]} : vector<18x128xf32> to vector<16x128xf32>
    %c0_6 = arith.constant 0 : index
    %c0_7 = arith.constant 0 : index
    %c0_8 = arith.constant 0 : index
    %23 = vector.load %arg3[%c0_6, %c0_7, %c0_8] : memref<3x128x128xf32, #tpu.memory_space<vmem>>, vector<1x128x128xf32>
    %24 = vector.shape_cast %23 : vector<1x128x128xf32> to vector<128x128xf32>
    %cst_9 = arith.constant dense<0.000000e+00> : vector<16x128xf32>
    %25 = tpu.matmul %20, %24, %cst_9 {dimension_numbers = #tpu.dot_dimension_numbers<[1], [0], [0], [1], [0, 0, 1, 1], [], []>} : vector<16x128xf32>, vector<128x128xf32>, vector<16x128xf32> -> vector<16x128xf32>
    %c1_10 = arith.constant 1 : index
    %c0_11 = arith.constant 0 : index
    %c0_12 = arith.constant 0 : index
    %26 = vector.load %arg3[%c1_10, %c0_11, %c0_12] : memref<3x128x128xf32, #tpu.memory_space<vmem>>, vector<1x128x128xf32>
    %27 = vector.shape_cast %26 : vector<1x128x128xf32> to vector<128x128xf32>
    %cst_13 = arith.constant dense<0.000000e+00> : vector<16x128xf32>
    %28 = tpu.matmul %21, %27, %cst_13 {dimension_numbers = #tpu.dot_dimension_numbers<[1], [0], [0], [1], [0, 0, 1, 1], [], []>} : vector<16x128xf32>, vector<128x128xf32>, vector<16x128xf32> -> vector<16x128xf32>
    %29 = arith.addf %25, %28 : vector<16x128xf32>
    %c2 = arith.constant 2 : index
    %c0_14 = arith.constant 0 : index
    %c0_15 = arith.constant 0 : index
    %30 = vector.load %arg3[%c2, %c0_14, %c0_15] : memref<3x128x128xf32, #tpu.memory_space<vmem>>, vector<1x128x128xf32>
    %31 = vector.shape_cast %30 : vector<1x128x128xf32> to vector<128x128xf32>
    %cst_16 = arith.constant dense<0.000000e+00> : vector<16x128xf32>
    %32 = tpu.matmul %22, %31, %cst_16 {dimension_numbers = #tpu.dot_dimension_numbers<[1], [0], [0], [1], [0, 0, 1, 1], [], []>} : vector<16x128xf32>, vector<128x128xf32>, vector<16x128xf32> -> vector<16x128xf32>
    %33 = arith.addf %29, %32 : vector<16x128xf32>
    %cst_17 = arith.constant dense<0.000000e+00> : vector<128xf32>
    %34 = vector.multi_reduction <add>, %33, %cst_17 [0] : vector<16x128xf32> to vector<128xf32>
    %35 = vector.shape_cast %34 : vector<128xf32> to vector<1x128xf32>
    %c0_18 = arith.constant 0 : index
    %c0_19 = arith.constant 0 : index
    %c0_20 = arith.constant 0 : index
    %36 = vector.load %arg5[%c0_18, %c0_19, %c0_20] : memref<1x2x128xf32, #tpu.memory_space<vmem>>, vector<1x1x128xf32>
    %37 = vector.shape_cast %36 : vector<1x1x128xf32> to vector<1x128xf32>
    %38 = vector.shape_cast %35 : vector<1x128xf32> to vector<1x1x128xf32>
    tpu.vector_store %arg5[%c0_18, %c0_19, %c0_20], %38 {strides = array<i32>} : memref<1x2x128xf32, #tpu.memory_space<vmem>>, vector<1x1x128xf32>,
    %39 = arith.mulf %33, %33 : vector<16x128xf32>
    %cst_21 = arith.constant dense<0.000000e+00> : vector<128xf32>
    %40 = vector.multi_reduction <add>, %39, %cst_21 [0] : vector<16x128xf32> to vector<128xf32>
    %41 = vector.shape_cast %40 : vector<128xf32> to vector<1x128xf32>
    %c0_22 = arith.constant 0 : index
    %c1_23 = arith.constant 1 : index
    %c0_24 = arith.constant 0 : index
    %42 = vector.load %arg5[%c0_22, %c1_23, %c0_24] : memref<1x2x128xf32, #tpu.memory_space<vmem>>, vector<1x1x128xf32>
    %43 = vector.shape_cast %42 : vector<1x1x128xf32> to vector<1x128xf32>
    %44 = vector.shape_cast %41 : vector<1x128xf32> to vector<1x1x128xf32>
    tpu.vector_store %arg5[%c0_22, %c1_23, %c0_24], %44 {strides = array<i32>} : memref<1x2x128xf32, #tpu.memory_space<vmem>>, vector<1x1x128xf32>,
    %c0_25 = arith.constant 0 : index
    %c0_26 = arith.constant 0 : index
    %c0_27 = arith.constant 0 : index
    %45 = vector.load %arg4[%c0_25, %c0_26, %c0_27] : memref<1x16x128xf32, #tpu.memory_space<vmem>>, vector<1x16x128xf32>
    %46 = vector.shape_cast %45 : vector<1x16x128xf32> to vector<16x128xf32>
    %47 = vector.shape_cast %33 : vector<16x128xf32> to vector<1x16x128xf32>
    tpu.vector_store %arg4[%c0_25, %c0_26, %c0_27], %47 {strides = array<i32>} : memref<1x16x128xf32, #tpu.memory_space<vmem>>, vector<1x16x128xf32>,
    return
  }
  func.func @transform_0(%arg0: i32) -> (i32, i32, i32) {
    %c0_i32 = arith.constant 0 : i32
    %c0_i32_0 = arith.constant 0 : i32
    %c0_i32_1 = arith.constant 0 : i32
    return %arg0, %c0_i32, %c0_i32_0 : i32, i32, i32
  }
  func.func @transform_1(%arg0: i32) -> (i32, i32) {
    %c0_i32 = arith.constant 0 : i32
    %c0_i32_0 = arith.constant 0 : i32
    %c0_i32_1 = arith.constant 0 : i32
    return %c0_i32, %c0_i32_0 : i32, i32
  }
  func.func @transform_2(%arg0: i32) -> (i32, i32, i32) {
    %c0_i32 = arith.constant 0 : i32
    %c0_i32_0 = arith.constant 0 : i32
    %c0_i32_1 = arith.constant 0 : i32
    %c0_i32_2 = arith.constant 0 : i32
    return %c0_i32, %c0_i32_0, %c0_i32_1 : i32, i32, i32
  }
  func.func @transform_3(%arg0: i32) -> (i32, i32, i32) {
    %c0_i32 = arith.constant 0 : i32
    %c0_i32_0 = arith.constant 0 : i32
    %c0_i32_1 = arith.constant 0 : i32
    return %arg0, %c0_i32, %c0_i32_0 : i32, i32, i32
  }
  func.func @transform_4(%arg0: i32) -> (i32, i32, i32) {
    %c0_i32 = arith.constant 0 : i32
    %c0_i32_0 = arith.constant 0 : i32
    %c0_i32_1 = arith.constant 0 : i32
    return %arg0, %c0_i32, %c0_i32_0 : i32, i32, i32
  }
}

module attributes {stable_mosaic.version = 11 : i64} {
  func.func @_bn2_residual_kernel(%arg0: i32, %arg1: memref<1x16x128xf32, #tpu.memory_space<vmem>>, %arg2: memref<1x18x128xf32, #tpu.memory_space<vmem>>, %arg3: memref<2x128xf32, #tpu.memory_space<vmem>>, %arg4: memref<1x16x128xf32, #tpu.memory_space<vmem>>) attributes {dimension_semantics = [#tpu.dimension_semantics<parallel>], iteration_bounds = array<i64: 2>, scalar_prefetch = 0 : i64, scratch_operands = 0 : i64, tpu.core_type = #tpu.core_type<tc>, window_params = [{transform_indices = @transform_0, window_bounds = array<i64: 1, 16, 128>}, {transform_indices = @transform_1, window_bounds = array<i64: 1, 18, 128>}, {pipeline_mode = #tpu.pipeline_mode<synchronous>, transform_indices = @transform_2, window_bounds = array<i64: 2, 128>}, {transform_indices = @transform_3, window_bounds = array<i64: 1, 16, 128>}]} {
    %c0 = arith.constant 0 : index
    %c0_0 = arith.constant 0 : index
    %0 = vector.load %arg3[%c0, %c0_0] : memref<2x128xf32, #tpu.memory_space<vmem>>, vector<1x128xf32>
    %c1 = arith.constant 1 : index
    %c0_1 = arith.constant 0 : index
    %1 = vector.load %arg3[%c1, %c0_1] : memref<2x128xf32, #tpu.memory_space<vmem>>, vector<1x128xf32>
    %c0_2 = arith.constant 0 : index
    %c0_3 = arith.constant 0 : index
    %c0_4 = arith.constant 0 : index
    %2 = vector.load %arg1[%c0_2, %c0_3, %c0_4] : memref<1x16x128xf32, #tpu.memory_space<vmem>>, vector<1x16x128xf32>
    %3 = vector.shape_cast %2 : vector<1x16x128xf32> to vector<16x128xf32>
    %c0_5 = arith.constant 0 : index
    %c1_6 = arith.constant 1 : index
    %c0_7 = arith.constant 0 : index
    %4 = vector.load %arg2[%c0_5, %c1_6, %c0_7] : memref<1x18x128xf32, #tpu.memory_space<vmem>>, vector<1x16x128xf32>
    %5 = vector.shape_cast %4 : vector<1x16x128xf32> to vector<16x128xf32>
    %6 = vector.broadcast %0 : vector<1x128xf32> to vector<16x128xf32>
    %7 = arith.mulf %3, %6 : vector<16x128xf32>
    %8 = vector.broadcast %1 : vector<1x128xf32> to vector<16x128xf32>
    %9 = arith.addf %7, %8 : vector<16x128xf32>
    %10 = arith.addf %9, %5 : vector<16x128xf32>
    %c0_8 = arith.constant 0 : index
    %c0_9 = arith.constant 0 : index
    %c0_10 = arith.constant 0 : index
    %11 = vector.load %arg4[%c0_8, %c0_9, %c0_10] : memref<1x16x128xf32, #tpu.memory_space<vmem>>, vector<1x16x128xf32>
    %12 = vector.shape_cast %11 : vector<1x16x128xf32> to vector<16x128xf32>
    %13 = vector.shape_cast %10 : vector<16x128xf32> to vector<1x16x128xf32>
    tpu.vector_store %arg4[%c0_8, %c0_9, %c0_10], %13 {strides = array<i32>} : memref<1x16x128xf32, #tpu.memory_space<vmem>>, vector<1x16x128xf32>,
    return
  }
  func.func @transform_0(%arg0: i32) -> (i32, i32, i32) {
    %c0_i32 = arith.constant 0 : i32
    %c0_i32_0 = arith.constant 0 : i32
    %c0_i32_1 = arith.constant 0 : i32
    return %arg0, %c0_i32, %c0_i32_0 : i32, i32, i32
  }
  func.func @transform_1(%arg0: i32) -> (i32, i32, i32) {
    %c0_i32 = arith.constant 0 : i32
    %c0_i32_0 = arith.constant 0 : i32
    %c0_i32_1 = arith.constant 0 : i32
    return %arg0, %c0_i32, %c0_i32_0 : i32, i32, i32
  }
  func.func @transform_2(%arg0: i32) -> (i32, i32) {
    %c0_i32 = arith.constant 0 : i32
    %c0_i32_0 = arith.constant 0 : i32
    %c0_i32_1 = arith.constant 0 : i32
    return %c0_i32, %c0_i32_0 : i32, i32
  }
  func.func @transform_3(%arg0: i32) -> (i32, i32, i32) {
    %c0_i32 = arith.constant 0 : i32
    %c0_i32_0 = arith.constant 0 : i32
    %c0_i32_1 = arith.constant 0 : i32
    return %arg0, %c0_i32, %c0_i32_0 : i32, i32, i32
  }
}

</mosaic_0001>

<llo_original>
// kernel: basic_block.5
$region0: #{basic_block.5}
  #allocation0 [shape = 'u32[]', space=smem, size = 0x4, offset = 0x4, fixed_abs, tag = 'smem constant byte address 0x4 - core index']
  #allocation1 [shape = 'u32[144,128]{1,0:T(1,128)}', space=vmem, size = 0x12000, scoped, tag = 'internal scratch']
  %s0 = inlined_call_operand.vmem [shape: f32[2,16,128], index: 0, kind: input, shape index: {}]
  %s1 = inlined_call_operand.vmem [shape: f32[2,18,128], index: 1, kind: input, shape index: {}]
  %s2 = inlined_call_operand.vmem [shape: f32[2,128], index: 2, kind: input, shape index: {}]
  %s3 = inlined_call_operand.vmem [shape: f32[2,16,128], index: 3, kind: output, shape index: {}]
  %s4 = sld [smem:[#allocation0]]
  $region45: #{basic_block.5} parent=0
    _
  %s6 = ssub.s32 1, %s4
  %s7 = scalar_select 0, %s6, %s4
  loop: start=0, step=1, limit=4
  $region2: #{basic_block.5} parent=0 // loop_pre_header
    _
  $region3: #{basic_block.5} parent=0 // loop_header
    %s9 = sphi 0, %s13
    %p10 = scmp.ge.s32.totalorder %s9, 4
    %s19 = sphi 0, %s21
    %s22 = sphi 0, %s19
    %s23 = sphi 0, %s22
    %s39 = sphi 0, %s23
    %s45 = sphi 0, %s47
    %s48 = sphi 0, %s45
    %s49 = sphi 0, %s48
    %s65 = sphi 0, %s49
    %s69 = sphi 0, %s69
    %s71 = sphi 0, %s69
    %s72 = sphi 0, %s71
    %s86 = sphi 0, %s72
    %s92 = sphi 0, %s94
    %s95 = sphi 0, %s92
    %s96 = sphi 0, %s95
    %s112 = sphi 0, %s96
  $region4: #{basic_block.5} parent=0 // loop_header_branch
    %12 = sbr.rel (%p10) target = $region8
  $region5: #{basic_block.5} parent=0 // loop_body
    %s14 = ssub.s32 %s9, 1
    %s15 = ssub.s32 %s9, 2
    %s16 = sadd.s32 %s9, 1
    %s17 = ssub.s32 %s9, %s16
    %p18 = scmp.eq.s32.totalorder %s17, 0
    %s20 = sadd.s32 %s19, 1
    %s21 = scalar_select %p18, %s19, %s20
    %p24 = pneg %p18
    %p25 = scmp.eq.s32.totalorder %s9, 1
    %p26 = por %p24, %p25
    %p27 = scmp.ne.s32.totalorder %s19, %s22
    %p28 = scmp.eq.s32.totalorder %s9, 0
    %p29 = por %p27, %p28
    %p30 = scmp.ne.s32.totalorder %s19, %s22
    %p31 = scmp.eq.s32.totalorder %s14, 1
    %p32 = por %p30, %p31
    %p33 = scmp.ne.s32.totalorder %s22, %s23
    %p34 = scmp.eq.s32.totalorder %s14, 0
    %p35 = por %p33, %p34
    %p36 = scmp.ne.s32.totalorder %s22, %s23
    %p37 = scmp.eq.s32.totalorder %s15, 1
    %p38 = por %p36, %p37
    %p40 = scmp.ne.s32.totalorder %s23, %s39
    %p41 = scmp.eq.s32.totalorder %s15, 0
    %p42 = por %p40, %p41
    %s43 = ssub.s32 %s9, %s16
    %p44 = scmp.eq.s32.totalorder %s43, 0
    %s46 = sadd.s32 %s45, 1
    %s47 = scalar_select %p44, %s45, %s46
    %p50 = pneg %p44
    %p51 = scmp.eq.s32.totalorder %s9, 1
    %p52 = por %p50, %p51
    %p53 = scmp.ne.s32.totalorder %s45, %s48
    %p54 = scmp.eq.s32.totalorder %s9, 0
    %p55 = por %p53, %p54
    %p56 = scmp.ne.s32.totalorder %s45, %s48
    %p57 = scmp.eq.s32.totalorder %s14, 1
    %p58 = por %p56, %p57
    %p59 = scmp.ne.s32.totalorder %s48, %s49
    %p60 = scmp.eq.s32.totalorder %s14, 0
    %p61 = por %p59, %p60
    %p62 = scmp.ne.s32.totalorder %s48, %s49
    %p63 = scmp.eq.s32.totalorder %s15, 1
    %p64 = por %p62, %p63
    %p66 = scmp.ne.s32.totalorder %s49, %s65
    %p67 = scmp.eq.s32.totalorder %s15, 0
    %p68 = por %p66, %p67
    %s70 = sadd.s32 %s69, 1
    %p73 = scmp.eq.s32.totalorder %s9, 1
    %p74 = scmp.ne.s32.totalorder %s69, %s71
    %p75 = scmp.eq.s32.totalorder %s9, 0
    %p76 = por %p74, %p75
    %p77 = scmp.ne.s32.totalorder %s69, %s71
    %p78 = scmp.eq.s32.totalorder %s14, 1
    %p79 = por %p77, %p78
    %p80 = scmp.ne.s32.totalorder %s71, %s72
    %p81 = scmp.eq.s32.totalorder %s14, 0
    %p82 = por %p80, %p81
    %p83 = scmp.ne.s32.totalorder %s71, %s72
    %p84 = scmp.eq.s32.totalorder %s15, 1
    %p85 = por %p83, %p84
    %p87 = scmp.ne.s32.totalorder %s72, %s86
    %p88 = scmp.eq.s32.totalorder %s15, 0
    %p89 = por %p87, %p88
    %s90 = ssub.s32 %s9, %s16
    %p91 = scmp.eq.s32.totalorder %s90, 0
    %s93 = sadd.s32 %s92, 1
    %s94 = scalar_select %p91, %s92, %s93
    %p97 = pneg %p91
    %p98 = scmp.eq.s32.totalorder %s9, 1
    %p99 = por %p97, %p98
    %p100 = scmp.ne.s32.totalorder %s92, %s95
    %p101 = scmp.eq.s32.totalorder %s9, 0
    %p102 = por %p100, %p101
    %p103 = scmp.ne.s32.totalorder %s92, %s95
    %p104 = scmp.eq.s32.totalorder %s14, 1
    %p105 = por %p103, %p104
    %p106 = scmp.ne.s32.totalorder %s95, %s96
    %p107 = scmp.eq.s32.totalorder %s14, 0
    %p108 = por %p106, %p107
    %p109 = scmp.ne.s32.totalorder %s95, %s96
    %p110 = scmp.eq.s32.totalorder %s15, 1
    %p111 = por %p109, %p110
    %p113 = scmp.ne.s32.totalorder %s96, %s112
    %p114 = scmp.eq.s32.totalorder %s15, 0
    %p115 = por %p113, %p114
    %p116 = scmp.le.s32.totalorder 1, %s9
    %p117 = scmp.lt.s32.totalorder %s9, 3
    %p118 = pnand %p116, %p117
    %p119 = pneg %p118
    // Predicated region
    $region9: #{basic_block.5} parent=5 // pred_check
      _
    $region10: #{basic_block.5} parent=5 // pred_check_branch
      %121 = sbr.rel (%p118) target = $region12
    $region11: #{basic_block.5} parent=5 // pred_region
      %s122 = ssub.s32 %s9, 1
      // Predicated region
      $region13: #{basic_block.5} parent=11 // pred_check
        %p123 = pneg %p82
      $region14: #{basic_block.5} parent=11 // pred_check_branch
        %125 = sbr.rel (%p123) target = $region16
      $region15: #{basic_block.5} parent=11 // pred_region
        _
      $region16: #{basic_block.5} parent=11 // pred_fallthru
        _
    $region12: #{basic_block.5} parent=5 // pred_fallthru
      _
    %p126 = scmp.lt.s32.totalorder %s9, 2
    // Predicated region
    $region17: #{basic_block.5} parent=5 // pred_check
      %p127 = pneg %p126
    $region18: #{basic_block.5} parent=5 // pred_check_branch
      %129 = sbr.rel (%p127) target = $region20
    $region19: #{basic_block.5} parent=5 // pred_region
      // Predicated region
      $region21: #{basic_block.5} parent=19 // pred_check
        %p130 = pneg %p29
      $region22: #{basic_block.5} parent=19 // pred_check_branch
        %132 = sbr.rel (%p130) target = $region24
      $region23: #{basic_block.5} parent=19 // pred_region
        %p133 = scmp.lt.s32.totalorder %s9, 1
        %s134 = scalar_select %p133, %s9, 1
        %s135 = smul.addr %s134, 2
        %s136 = smul.addr %s135, 8
        %s137 = scalar_lea.vmem %s0, %s136
      $region24: #{basic_block.5} parent=19 // pred_fallthru
        _
      // Predicated region
      $region25: #{basic_block.5} parent=19 // pred_check
        %p138 = pneg %p55
      $region26: #{basic_block.5} parent=19 // pred_check_branch
        %140 = sbr.rel (%p138) target = $region28
      $region27: #{basic_block.5} parent=19 // pred_region
        %p141 = scmp.lt.s32.totalorder %s9, 1
        %s142 = scalar_select %p141, %s9, 1
        %s143 = smul.addr %s142, 3
        %s144 = smul.addr %s143, 8
        %s145 = scalar_lea.vmem %s1, %s144
      $region28: #{basic_block.5} parent=19 // pred_fallthru
        _
    $region20: #{basic_block.5} parent=5 // pred_fallthru
      _
    %p146 = scmp.le.s32.totalorder 1, %s9
    %p147 = scmp.lt.s32.totalorder %s9, 3
    %p148 = pnand %p146, %p147
    %p149 = pneg %p148
    // Predicated region
    $region29: #{basic_block.5} parent=5 // pred_check
      _
    $region30: #{basic_block.5} parent=5 // pred_check_branch
      %151 = sbr.rel (%p148) target = $region32
    $region31: #{basic_block.5} parent=5 // pred_region
      %s152 = ssub.s32 %s9, 1
      %p153 = scmp.lt.s32.totalorder %s14, 1
      %s154 = scalar_select %p153, %s14, 1
      %s155 = smul.addr %s154, 2
      %s156 = smul.addr %s155, 8
      %s157 = scalar_lea.vmem %s0, %s156
      %p158 = pneg %p35
      %p159 = pneg %p32
      %p160 = scmp.lt.s32.totalorder %s14, 1
      %s161 = scalar_select %p160, %s14, 1
      %s162 = smul.addr %s161, 3
      %s163 = smul.addr %s162, 8
      %s164 = scalar_lea.vmem %s1, %s163
      %p165 = pneg %p61
      %p166 = pneg %p58
      %p167 = pneg %p82
      %p168 = pneg %p79
      %p169 = pneg %p108
      %p170 = pneg %p105
      %p171 = scmp.lt.s32.totalorder %s14, 1
      %s172 = scalar_select %p171, %s14, 1
      %s173 = smul.addr %s172, 2
      %s174 = smul.addr %s173, 8
      %s175 = scalar_lea.vmem %s3, %s174
      %p176 = scmp.lt.s32.totalorder %s14, 1
      %s177 = scalar_select %p176, %s14, 1
      %s178 = smul.addr %s177, 2
      %s179 = smul.addr %s178, 8
      %s180 = scalar_lea.vmem %s0, %s179
      %p181 = scmp.lt.s32.totalorder %s14, 1
      %s182 = scalar_select %p181, %s14, 1
      %s183 = smul.addr %s182, 3
      %s184 = smul.addr %s183, 8
      %s185 = scalar_lea.vmem %s1, %s184
      %p186 = scmp.lt.s32.totalorder %s14, 1
      %s187 = scalar_select %p186, %s14, 1
      %s188 = smul.addr %s187, 2
      %s189 = smul.addr %s188, 8
      %s190 = scalar_lea.vmem %s3, %s189
      %v191 = vld [vmem:[%s2] sm:$0x1]
      %v192 = vld [vmem:[%s2 + $0x1] sm:$0x1]
      %v193 = vld [vmem:[%s180] sm:$0xff]
      %v194 = vld [vmem:[%s180 + $0x8] sm:$0xff]
      %v195 = vld [vmem:[%s185 + $0x1] sm:$0xff]
      %v196 = vld [vmem:[%s185 + $0x9] sm:$0xff]
      %v197 = vlaneseq
      %v198 = vshrl.u32 %v197, 7
      %v199 = vsub.s32 0, %v198
      %v200 = vrot.slane %v191, %v199
      %v201 = vmul.f32 %v193, %v200
      %v202 = vmul.f32 %v194, %v200
      %v203 = vlaneseq
      %v204 = vshrl.u32 %v203, 7
      %v205 = vsub.s32 0, %v204
      %v206 = vrot.slane %v192, %v205
      %v207 = vadd.f32 %v201, %v206
      %v208 = vadd.f32 %v202, %v206
      %v209 = vadd.f32 %v207, %v195
      %v210 = vadd.f32 %v208, %v196
      %211 = vst [vmem:[%s190] sm:$0xff] %v209
      %212 = vst [vmem:[%s190 + $0x8] sm:$0xff] %v210
      %p213 = scmp.lt.s32.totalorder %s14, 1
      %s214 = scalar_select %p213, %s14, 1
      %s215 = smul.addr %s214, 2
      %s216 = smul.addr %s215, 8
      %s217 = scalar_lea.vmem %s3, %s216
      // Predicated region
      $region33: #{basic_block.5} parent=31 // pred_check
        %p218 = pneg %p105
      $region34: #{basic_block.5} parent=31 // pred_check_branch
        %220 = sbr.rel (%p218) target = $region36
      $region35: #{basic_block.5} parent=31 // pred_region
        _
      $region36: #{basic_block.5} parent=31 // pred_fallthru
        _
    $region32: #{basic_block.5} parent=5 // pred_fallthru
      _
    %p221 = scmp.le.s32.totalorder 2, %s9
    // Predicated region
    $region37: #{basic_block.5} parent=5 // pred_check
      %p222 = pneg %p221
    $region38: #{basic_block.5} parent=5 // pred_check_branch
      %224 = sbr.rel (%p222) target = $region40
    $region39: #{basic_block.5} parent=5 // pred_region
      %s225 = ssub.s32 %s9, 2
      // Predicated region
      $region41: #{basic_block.5} parent=39 // pred_check
        %p226 = pneg %p111
      $region42: #{basic_block.5} parent=39 // pred_check_branch
        %228 = sbr.rel (%p226) target = $region44
      $region43: #{basic_block.5} parent=39 // pred_region
        %p229 = scmp.lt.s32.totalorder %s15, 1
        %s230 = scalar_select %p229, %s15, 1
        %s231 = smul.addr %s230, 2
        %s232 = smul.addr %s231, 8
        %s233 = scalar_lea.vmem %s3, %s232
      $region44: #{basic_block.5} parent=39 // pred_fallthru
        _
    $region40: #{basic_block.5} parent=5 // pred_fallthru
      _
  $region6: #{basic_block.5} parent=0 // loop_footer
    %s13 = sadd.s32 1, %s9
  $region7: #{basic_block.5} parent=0 // loop_footer_branch
    %8 = sbr.rel target = $region3
  $region8: #{basic_block.5} parent=0 // loop_exit
    _

// kernel: basic_block.3
$region0: #{basic_block.3}
  #allocation0 [shape = 'u32[]', space=smem, size = 0x4, offset = 0x4, fixed_abs, tag = 'smem constant byte address 0x4 - core index']
  #allocation1 [shape = 'u32[144,128]{1,0:T(1,128)}', space=vmem, size = 0x12000, scoped, tag = 'internal scratch']
  %s0 = inlined_call_operand.vmem [shape: f32[2,18,128], index: 0, kind: input, shape index: {}]
  %s1 = inlined_call_operand.vmem [shape: f32[3,128,128], index: 1, kind: input, shape index: {}]
  %s2 = inlined_call_operand.vmem [shape: f32[2,18,128], index: 2, kind: output, shape index: {0}]
  %s3 = inlined_call_operand.vmem [shape: f32[2,2,128], index: 3, kind: output, shape index: {1}]
  %4 = xla_tuple %s2, %s3
  %s5 = sld [smem:[#allocation0]]
  $region49: #{basic_block.3} parent=0
    _
  %s7 = ssub.s32 1, %s5
  %s8 = scalar_select 0, %s7, %s5
  loop: start=0, step=1, limit=4
  $region2: #{basic_block.3} parent=0 // loop_pre_header
    _
  $region3: #{basic_block.3} parent=0 // loop_header
    %s10 = sphi 0, %s14
    %p11 = scmp.ge.s32.totalorder %s10, 4
    %s20 = sphi 0, %s22
    %s23 = sphi 0, %s20
    %s24 = sphi 0, %s23
    %s40 = sphi 0, %s24
    %s44 = sphi 0, %s44
    %s46 = sphi 0, %s44
    %s47 = sphi 0, %s46
    %s61 = sphi 0, %s47
    %s67 = sphi 0, %s69
    %s70 = sphi 0, %s67
    %s71 = sphi 0, %s70
    %s87 = sphi 0, %s71
    %s93 = sphi 0, %s95
    %s96 = sphi 0, %s93
    %s97 = sphi 0, %s96
    %s113 = sphi 0, %s97
  $region4: #{basic_block.3} parent=0 // loop_header_branch
    %13 = sbr.rel (%p11) target = $region8
  $region5: #{basic_block.3} parent=0 // loop_body
    %s15 = ssub.s32 %s10, 1
    %s16 = ssub.s32 %s10, 2
    %s17 = sadd.s32 %s10, 1
    %s18 = ssub.s32 %s10, %s17
    %p19 = scmp.eq.s32.totalorder %s18, 0
    %s21 = sadd.s32 %s20, 1
    %s22 = scalar_select %p19, %s20, %s21
    %p25 = pneg %p19
    %p26 = scmp.eq.s32.totalorder %s10, 1
    %p27 = por %p25, %p26
    %p28 = scmp.ne.s32.totalorder %s20, %s23
    %p29 = scmp.eq.s32.totalorder %s10, 0
    %p30 = por %p28, %p29
    %p31 = scmp.ne.s32.totalorder %s20, %s23
    %p32 = scmp.eq.s32.totalorder %s15, 1
    %p33 = por %p31, %p32
    %p34 = scmp.ne.s32.totalorder %s23, %s24
    %p35 = scmp.eq.s32.totalorder %s15, 0
    %p36 = por %p34, %p35
    %p37 = scmp.ne.s32.totalorder %s23, %s24
    %p38 = scmp.eq.s32.totalorder %s16, 1
    %p39 = por %p37, %p38
    %p41 = scmp.ne.s32.totalorder %s24, %s40
    %p42 = scmp.eq.s32.totalorder %s16, 0
    %p43 = por %p41, %p42
    %s45 = sadd.s32 %s44, 1
    %p48 = scmp.eq.s32.totalorder %s10, 1
    %p49 = scmp.ne.s32.totalorder %s44, %s46
    %p50 = scmp.eq.s32.totalorder %s10, 0
    %p51 = por %p49, %p50
    %p52 = scmp.ne.s32.totalorder %s44, %s46
    %p53 = scmp.eq.s32.totalorder %s15, 1
    %p54 = por %p52, %p53
    %p55 = scmp.ne.s32.totalorder %s46, %s47
    %p56 = scmp.eq.s32.totalorder %s15, 0
    %p57 = por %p55, %p56
    %p58 = scmp.ne.s32.totalorder %s46, %s47
    %p59 = scmp.eq.s32.totalorder %s16, 1
    %p60 = por %p58, %p59
    %p62 = scmp.ne.s32.totalorder %s47, %s61
    %p63 = scmp.eq.s32.totalorder %s16, 0
    %p64 = por %p62, %p63
    %s65 = ssub.s32 %s10, %s17
    %p66 = scmp.eq.s32.totalorder %s65, 0
    %s68 = sadd.s32 %s67, 1
    %s69 = scalar_select %p66, %s67, %s68
    %p72 = pneg %p66
    %p73 = scmp.eq.s32.totalorder %s10, 1
    %p74 = por %p72, %p73
    %p75 = scmp.ne.s32.totalorder %s67, %s70
    %p76 = scmp.eq.s32.totalorder %s10, 0
    %p77 = por %p75, %p76
    %p78 = scmp.ne.s32.totalorder %s67, %s70
    %p79 = scmp.eq.s32.totalorder %s15, 1
    %p80 = por %p78, %p79
    %p81 = scmp.ne.s32.totalorder %s70, %s71
    %p82 = scmp.eq.s32.totalorder %s15, 0
    %p83 = por %p81, %p82
    %p84 = scmp.ne.s32.totalorder %s70, %s71
    %p85 = scmp.eq.s32.totalorder %s16, 1
    %p86 = por %p84, %p85
    %p88 = scmp.ne.s32.totalorder %s71, %s87
    %p89 = scmp.eq.s32.totalorder %s16, 0
    %p90 = por %p88, %p89
    %s91 = ssub.s32 %s10, %s17
    %p92 = scmp.eq.s32.totalorder %s91, 0
    %s94 = sadd.s32 %s93, 1
    %s95 = scalar_select %p92, %s93, %s94
    %p98 = pneg %p92
    %p99 = scmp.eq.s32.totalorder %s10, 1
    %p100 = por %p98, %p99
    %p101 = scmp.ne.s32.totalorder %s93, %s96
    %p102 = scmp.eq.s32.totalorder %s10, 0
    %p103 = por %p101, %p102
    %p104 = scmp.ne.s32.totalorder %s93, %s96
    %p105 = scmp.eq.s32.totalorder %s15, 1
    %p106 = por %p104, %p105
    %p107 = scmp.ne.s32.totalorder %s96, %s97
    %p108 = scmp.eq.s32.totalorder %s15, 0
    %p109 = por %p107, %p108
    %p110 = scmp.ne.s32.totalorder %s96, %s97
    %p111 = scmp.eq.s32.totalorder %s16, 1
    %p112 = por %p110, %p111
    %p114 = scmp.ne.s32.totalorder %s97, %s113
    %p115 = scmp.eq.s32.totalorder %s16, 0
    %p116 = por %p114, %p115
    %p117 = scmp.le.s32.totalorder 1, %s10
    %p118 = scmp.lt.s32.totalorder %s10, 3
    %p119 = pnand %p117, %p118
    %p120 = pneg %p119
    // Predicated region
    $region9: #{basic_block.3} parent=5 // pred_check
      _
    $region10: #{basic_block.3} parent=5 // pred_check_branch
      %122 = sbr.rel (%p119) target = $region12
    $region11: #{basic_block.3} parent=5 // pred_region
      %s123 = ssub.s32 %s10, 1
      // Predicated region
      $region13: #{basic_block.3} parent=11 // pred_check
        %p124 = pneg %p57
      $region14: #{basic_block.3} parent=11 // pred_check_branch
        %126 = sbr.rel (%p124) target = $region16
      $region15: #{basic_block.3} parent=11 // pred_region
        _
      $region16: #{basic_block.3} parent=11 // pred_fallthru
        _
    $region12: #{basic_block.3} parent=5 // pred_fallthru
      _
    %p127 = scmp.lt.s32.totalorder %s10, 2
    // Predicated region
    $region17: #{basic_block.3} parent=5 // pred_check
      %p128 = pneg %p127
    $region18: #{basic_block.3} parent=5 // pred_check_branch
      %130 = sbr.rel (%p128) target = $region20
    $region19: #{basic_block.3} parent=5 // pred_region
      // Predicated region
      $region21: #{basic_block.3} parent=19 // pred_check
        %p131 = pneg %p30
      $region22: #{basic_block.3} parent=19 // pred_check_branch
        %133 = sbr.rel (%p131) target = $region24
      $region23: #{basic_block.3} parent=19 // pred_region
        %p134 = scmp.lt.s32.totalorder %s10, 1
        %s135 = scalar_select %p134, %s10, 1
        %s136 = smul.addr %s135, 3
        %s137 = smul.addr %s136, 8
        %s138 = scalar_lea.vmem %s0, %s137
      $region24: #{basic_block.3} parent=19 // pred_fallthru
        _
    $region20: #{basic_block.3} parent=5 // pred_fallthru
      _
    %p139 = scmp.le.s32.totalorder 1, %s10
    %p140 = scmp.lt.s32.totalorder %s10, 3
    %p141 = pnand %p139, %p140
    %p142 = pneg %p141
    // Predicated region
    $region25: #{basic_block.3} parent=5 // pred_check
      _
    $region26: #{basic_block.3} parent=5 // pred_check_branch
      %144 = sbr.rel (%p141) target = $region28
    $region27: #{basic_block.3} parent=5 // pred_region
      %s145 = ssub.s32 %s10, 1
      %p146 = scmp.lt.s32.totalorder %s15, 1
      %s147 = scalar_select %p146, %s15, 1
      %s148 = smul.addr %s147, 3
      %s149 = smul.addr %s148, 8
      %s150 = scalar_lea.vmem %s0, %s149
      %p151 = pneg %p36
      %p152 = pneg %p33
      %p153 = pneg %p57
      %p154 = pneg %p54
      %p155 = pneg %p83
      %p156 = pneg %p80
      %p157 = scmp.lt.s32.totalorder %s15, 1
      %s158 = scalar_select %p157, %s15, 1
      %s159 = smul.addr %s158, 3
      %s160 = smul.addr %s159, 8
      %s161 = scalar_lea.vmem %s2, %s160
      %p162 = pneg %p109
      %p163 = pneg %p106
      %p164 = scmp.lt.s32.totalorder %s15, 1
      %s165 = scalar_select %p164, %s15, 1
      %s166 = smul.addr %s165, 2
      %s167 = scalar_lea.vmem %s3, %s166
      %p168 = scmp.lt.s32.totalorder %s15, 1
      %s169 = scalar_select %p168, %s15, 1
      %s170 = smul.addr %s169, 3
      %s171 = smul.addr %s170, 8
      %s172 = scalar_lea.vmem %s0, %s171
      %p173 = scmp.lt.s32.totalorder %s15, 1
      %s174 = scalar_select %p173, %s15, 1
      %s175 = smul.addr %s174, 3
      %s176 = smul.addr %s175, 8
      %s177 = scalar_lea.vmem %s2, %s176
      %p178 = scmp.lt.s32.totalorder %s15, 1
      %s179 = scalar_select %p178, %s15, 1
      %s180 = smul.addr %s179, 2
      %s181 = scalar_lea.vmem %s3, %s180
      %v182 = vld [vmem:[%s172] sm:$0xff]
      %v183 = vld [vmem:[%s172 + $0x8] sm:$0xff]
      %v184 = vld [vmem:[%s172 + $0x1] sm:$0xff]
      %v185 = vld [vmem:[%s172 + $0x9] sm:$0xff]
      %v186 = vld [vmem:[%s172 + $0x2] sm:$0xff]
      %v187 = vld [vmem:[%s172 + $0xa] sm:$0xff]
      %v188 = vld [vmem:[%s1] sm:$0xff]
      %v189 = vld [vmem:[%s1 + $0x8] sm:$0xff]
      %v190 = vld [vmem:[%s1 + $0x10] sm:$0xff]
      %v191 = vld [vmem:[%s1 + $0x18] sm:$0xff]
      %v192 = vld [vmem:[%s1 + $0x20] sm:$0xff]
      %v193 = vld [vmem:[%s1 + $0x28] sm:$0xff]
      %v194 = vld [vmem:[%s1 + $0x30] sm:$0xff]
      %v195 = vld [vmem:[%s1 + $0x38] sm:$0xff]
      %v196 = vld [vmem:[%s1 + $0x40] sm:$0xff]
      %v197 = vld [vmem:[%s1 + $0x48] sm:$0xff]
      %v198 = vld [vmem:[%s1 + $0x50] sm:$0xff]
      %v199 = vld [vmem:[%s1 + $0x58] sm:$0xff]
      %v200 = vld [vmem:[%s1 + $0x60] sm:$0xff]
      %v201 = vld [vmem:[%s1 + $0x68] sm:$0xff]
      %v202 = vld [vmem:[%s1 + $0x70] sm:$0xff]
      %v203 = vld [vmem:[%s1 + $0x78] sm:$0xff]
      %s204 = scalar_lea.vmem %s1, 128
      %v205 = vld [vmem:[%s204] sm:$0xff]
      %v206 = vld [vmem:[%s204 + $0x8] sm:$0xff]
      %v207 = vld [vmem:[%s204 + $0x10] sm:$0xff]
      %v208 = vld [vmem:[%s204 + $0x18] sm:$0xff]
      %v209 = vld [vmem:[%s204 + $0x20] sm:$0xff]
      %v210 = vld [vmem:[%s204 + $0x28] sm:$0xff]
      %v211 = vld [vmem:[%s204 + $0x30] sm:$0xff]
      %v212 = vld [vmem:[%s204 + $0x38] sm:$0xff]
      %v213 = vld [vmem:[%s204 + $0x40] sm:$0xff]
      %v214 = vld [vmem:[%s204 + $0x48] sm:$0xff]
      %v215 = vld [vmem:[%s204 + $0x50] sm:$0xff]
      %v216 = vld [vmem:[%s204 + $0x58] sm:$0xff]
      %v217 = vld [vmem:[%s204 + $0x60] sm:$0xff]
      %v218 = vld [vmem:[%s204 + $0x68] sm:$0xff]
      %v219 = vld [vmem:[%s204 + $0x70] sm:$0xff]
      %v220 = vld [vmem:[%s204 + $0x78] sm:$0xff]
      %221 = vmatprep.subr.mxu0 0.0
      %222 = vmatpush1.msra.mxu0 %v220
      %223 = vmatprep.subr.mxu0 0.0
      %224 = vmatpush1.msra.mxu0 %v219
      %225 = vmatprep.subr.mxu0 0.0
      %226 = vmatpush1.msra.mxu0 %v218
      %227 = vmatprep.subr.mxu0 0.0
      %228 = vmatpush1.msra.mxu0 %v217
      %229 = vmatprep.subr.mxu0 0.0
      %230 = vmatpush1.msra.mxu0 %v216
      %231 = vmatprep.subr.mxu0 0.0
      %232 = vmatpush1.msra.mxu0 %v215
      %233 = vmatprep.subr.mxu0 0.0
      %234 = vmatpush1.msra.mxu0 %v214
      %235 = vmatprep.subr.mxu0 0.0
      %236 = vmatpush1.msra.mxu0 %v213
      %237 = vmatprep.subr.mxu0 0.0
      %238 = vmatpush1.msra.mxu0 %v212
      %239 = vmatprep.subr.mxu0 0.0
      %240 = vmatpush1.msra.mxu0 %v211
      %241 = vmatprep.subr.mxu0 0.0
      %242 = vmatpush1.msra.mxu0 %v210
      %243 = vmatprep.subr.mxu0 0.0
      %244 = vmatpush1.msra.mxu0 %v209
      %245 = vmatprep.subr.mxu0 0.0
      %246 = vmatpush1.msra.mxu0 %v208
      %247 = vmatprep.subr.mxu0 0.0
      %248 = vmatpush1.msra.mxu0 %v207
      %249 = vmatprep.subr.mxu0 0.0
      %250 = vmatpush1.msra.mxu0 %v206
      %251 = vmatprep.subr.mxu0 0.0
      %252 = vmatpush1.msra.mxu0 %v205
      %253 = vmatprep.subr.mxu0 0.0
      %254 = vmatpush2.msra.mxu0 0.0
      %255 = vmatprep.subr.mxu0 0.0
      %256 = vmatpush2.msra.mxu0 0.0
      %257 = vmatprep.subr.mxu0 0.0
      %258 = vmatpush2.msra.mxu0 0.0
      %259 = vmatprep.subr.mxu0 0.0
      %260 = vmatpush2.msra.mxu0 0.0
      %261 = vmatprep.subr.mxu0 0.0
      %262 = vmatpush2.msra.mxu0 0.0
      %263 = vmatprep.subr.mxu0 0.0
      %264 = vmatpush2.msra.mxu0 0.0
      %265 = vmatprep.subr.mxu0 0.0
      %266 = vmatpush2.msra.mxu0 0.0
      %267 = vmatprep.subr.mxu0 0.0
      %268 = vmatpush2.msra.mxu0 0.0
      %269 = vmatprep.subr.mxu0 0.0
      %270 = vmatpush2.msra.mxu0 0.0
      %271 = vmatprep.subr.mxu0 0.0
      %272 = vmatpush2.msra.mxu0 0.0
      %273 = vmatprep.subr.mxu0 0.0
      %274 = vmatpush2.msra.mxu0 0.0
      %275 = vmatprep.subr.mxu0 0.0
      %276 = vmatpush2.msra.mxu0 0.0
      %277 = vmatprep.subr.mxu0 0.0
      %278 = vmatpush2.msra.mxu0 0.0
      %279 = vmatprep.subr.mxu0 0.0
      %280 = vmatpush2.msra.mxu0 0.0
      %281 = vmatprep.subr.mxu0 0.0
      %282 = vmatpush2.msra.mxu0 0.0
      %283 = vmatprep.subr.mxu0 0.0
      %284 = vmatpush2.msra.mxu0 0.0
      %285 = vmatprep.mubr.f32.mxu0 0.0
      %286 = vmatmul.mubr.f32.gmra.mxu0 %v184
      %v287 = vpop.f32.mrf.mxu0
      %v288 = vadd.f32 0.0, %v287
      %v289 = vpop.f32.mrf.mxu0
      %290 = vmatprep.mubr.f32.mxu0 0.0
      %291 = vmatmul.mubr.f32.gmra.mxu0 %v185
      %v292 = vpop.f32.mrf.mxu0
      %v293 = vadd.f32 0.0, %v292
      %v294 = vpop.f32.mrf.mxu0
      %295 = vdwg.mxu0
      %296 = vmatprep.subr.mxu0 0.0
      %297 = vmatpush1.msra.mxu0 %v203
      %298 = vmatprep.subr.mxu0 0.0
      %299 = vmatpush1.msra.mxu0 %v202
      %300 = vmatprep.subr.mxu0 0.0
      %301 = vmatpush1.msra.mxu0 %v201
      %302 = vmatprep.subr.mxu0 0.0
      %303 = vmatpush1.msra.mxu0 %v200
      %304 = vmatprep.subr.mxu0 0.0
      %305 = vmatpush1.msra.mxu0 %v199
      %306 = vmatprep.subr.mxu0 0.0
      %307 = vmatpush1.msra.mxu0 %v198
      %308 = vmatprep.subr.mxu0 0.0
      %309 = vmatpush1.msra.mxu0 %v197
      %310 = vmatprep.subr.mxu0 0.0
      %311 = vmatpush1.msra.mxu0 %v196
      %312 = vmatprep.subr.mxu0 0.0
      %313 = vmatpush1.msra.mxu0 %v195
      %314 = vmatprep.subr.mxu0 0.0
      %315 = vmatpush1.msra.mxu0 %v194
      %316 = vmatprep.subr.mxu0 0.0
      %317 = vmatpush1.msra.mxu0 %v193
      %318 = vmatprep.subr.mxu0 0.0
      %319 = vmatpush1.msra.mxu0 %v192
      %320 = vmatprep.subr.mxu0 0.0
      %321 = vmatpush1.msra.mxu0 %v191
      %322 = vmatprep.subr.mxu0 0.0
      %323 = vmatpush1.msra.mxu0 %v190
      %324 = vmatprep.subr.mxu0 0.0
      %325 = vmatpush1.msra.mxu0 %v189
      %326 = vmatprep.subr.mxu0 0.0
      %327 = vmatpush1.msra.mxu0 %v188
      %328 = vmatprep.subr.mxu0 0.0
      %329 = vmatpush2.msra.mxu0 0.0
      %330 = vmatprep.subr.mxu0 0.0
      %331 = vmatpush2.msra.mxu0 0.0
      %332 = vmatprep.subr.mxu0 0.0
      %333 = vmatpush2.msra.mxu0 0.0
      %334 = vmatprep.subr.mxu0 0.0
      %335 = vmatpush2.msra.mxu0 0.0
      %336 = vmatprep.subr.mxu0 0.0
      %337 = vmatpush2.msra.mxu0 0.0
      %338 = vmatprep.subr.mxu0 0.0
      %339 = vmatpush2.msra.mxu0 0.0
      %340 = vmatprep.subr.mxu0 0.0
      %341 = vmatpush2.msra.mxu0 0.0
      %342 = vmatprep.subr.mxu0 0.0
      %343 = vmatpush2.msra.mxu0 0.0
      %344 = vmatprep.subr.mxu0 0.0
      %345 = vmatpush2.msra.mxu0 0.0
      %346 = vmatprep.subr.mxu0 0.0
      %347 = vmatpush2.msra.mxu0 0.0
      %348 = vmatprep.subr.mxu0 0.0
      %349 = vmatpush2.msra.mxu0 0.0
      %350 = vmatprep.subr.mxu0 0.0
      %351 = vmatpush2.msra.mxu0 0.0
      %352 = vmatprep.subr.mxu0 0.0
      %353 = vmatpush2.msra.mxu0 0.0
      %354 = vmatprep.subr.mxu0 0.0
      %355 = vmatpush2.msra.mxu0 0.0
      %356 = vmatprep.subr.mxu0 0.0
      %357 = vmatpush2.msra.mxu0 0.0
      %358 = vmatprep.subr.mxu0 0.0
      %359 = vmatpush2.msra.mxu0 0.0
      %360 = vmatprep.mubr.f32.mxu0 0.0
      %361 = vmatmul.mubr.f32.gmra.mxu0 %v182
      %v362 = vpop.f32.mrf.mxu0
      %v363 = vadd.f32 %v288, %v362
      %v364 = vpop.f32.mrf.mxu0
      %365 = vmatprep.mubr.f32.mxu0 0.0
      %366 = vmatmul.mubr.f32.gmra.mxu0 %v183
      %v367 = vpop.f32.mrf.mxu0
      %v368 = vadd.f32 %v293, %v367
      %v369 = vpop.f32.mrf.mxu0
      %370 = vdwg.mxu0
      %s371 = scalar_lea.vmem %s1, 256
      %v372 = vld [vmem:[%s371] sm:$0xff]
      %v373 = vld [vmem:[%s371 + $0x8] sm:$0xff]
      %v374 = vld [vmem:[%s371 + $0x10] sm:$0xff]
      %v375 = vld [vmem:[%s371 + $0x18] sm:$0xff]
      %v376 = vld [vmem:[%s371 + $0x20] sm:$0xff]
      %v377 = vld [vmem:[%s371 + $0x28] sm:$0xff]
      %v378 = vld [vmem:[%s371 + $0x30] sm:$0xff]
      %v379 = vld [vmem:[%s371 + $0x38] sm:$0xff]
      %v380 = vld [vmem:[%s371 + $0x40] sm:$0xff]
      %v381 = vld [vmem:[%s371 + $0x48] sm:$0xff]
      %v382 = vld [vmem:[%s371 + $0x50] sm:$0xff]
      %v383 = vld [vmem:[%s371 + $0x58] sm:$0xff]
      %v384 = vld [vmem:[%s371 + $0x60] sm:$0xff]
      %v385 = vld [vmem:[%s371 + $0x68] sm:$0xff]
      %v386 = vld [vmem:[%s371 + $0x70] sm:$0xff]
      %v387 = vld [vmem:[%s371 + $0x78] sm:$0xff]
      %388 = vmatprep.subr.mxu0 0.0
      %389 = vmatpush1.msra.mxu0 %v387
      %390 = vmatprep.subr.mxu0 0.0
      %391 = vmatpush1.msra.mxu0 %v386
      %392 = vmatprep.subr.mxu0 0.0
      %393 = vmatpush1.msra.mxu0 %v385
      %394 = vmatprep.subr.mxu0 0.0
      %395 = vmatpush1.msra.mxu0 %v384
      %396 = vmatprep.subr.mxu0 0.0
      %397 = vmatpush1.msra.mxu0 %v383
      %398 = vmatprep.subr.mxu0 0.0
      %399 = vmatpush1.msra.mxu0 %v382
      %400 = vmatprep.subr.mxu0 0.0
      %401 = vmatpush1.msra.mxu0 %v381
      %402 = vmatprep.subr.mxu0 0.0
      %403 = vmatpush1.msra.mxu0 %v380
      %404 = vmatprep.subr.mxu0 0.0
      %405 = vmatpush1.msra.mxu0 %v379
      %406 = vmatprep.subr.mxu0 0.0
      %407 = vmatpush1.msra.mxu0 %v378
      %408 = vmatprep.subr.mxu0 0.0
      %409 = vmatpush1.msra.mxu0 %v377
      %410 = vmatprep.subr.mxu0 0.0
      %411 = vmatpush1.msra.mxu0 %v376
      %412 = vmatprep.subr.mxu0 0.0
      %413 = vmatpush1.msra.mxu0 %v375
      %414 = vmatprep.subr.mxu0 0.0
      %415 = vmatpush1.msra.mxu0 %v374
      %416 = vmatprep.subr.mxu0 0.0
      %417 = vmatpush1.msra.mxu0 %v373
      %418 = vmatprep.subr.mxu0 0.0
      %419 = vmatpush1.msra.mxu0 %v372
      %420 = vmatprep.subr.mxu0 0.0
      %421 = vmatpush2.msra.mxu0 0.0
      %422 = vmatprep.subr.mxu0 0.0
      %423 = vmatpush2.msra.mxu0 0.0
      %424 = vmatprep.subr.mxu0 0.0
      %425 = vmatpush2.msra.mxu0 0.0
      %426 = vmatprep.subr.mxu0 0.0
      %427 = vmatpush2.msra.mxu0 0.0
      %428 = vmatprep.subr.mxu0 0.0
      %429 = vmatpush2.msra.mxu0 0.0
      %430 = vmatprep.subr.mxu0 0.0
      %431 = vmatpush2.msra.mxu0 0.0
      %432 = vmatprep.subr.mxu0 0.0
      %433 = vmatpush2.msra.mxu0 0.0
      %434 = vmatprep.subr.mxu0 0.0
      %435 = vmatpush2.msra.mxu0 0.0
      %436 = vmatprep.subr.mxu0 0.0
      %437 = vmatpush2.msra.mxu0 0.0
      %438 = vmatprep.subr.mxu0 0.0
      %439 = vmatpush2.msra.mxu0 0.0
      %440 = vmatprep.subr.mxu0 0.0
      %441 = vmatpush2.msra.mxu0 0.0
      %442 = vmatprep.subr.mxu0 0.0
      %443 = vmatpush2.msra.mxu0 0.0
      %444 = vmatprep.subr.mxu0 0.0
      %445 = vmatpush2.msra.mxu0 0.0
      %446 = vmatprep.subr.mxu0 0.0
      %447 = vmatpush2.msra.mxu0 0.0
      %448 = vmatprep.subr.mxu0 0.0
      %449 = vmatpush2.msra.mxu0 0.0
      %450 = vmatprep.subr.mxu0 0.0
      %451 = vmatpush2.msra.mxu0 0.0
      %452 = vmatprep.mubr.f32.mxu0 0.0
      %453 = vmatmul.mubr.f32.gmra.mxu0 %v186
      %v454 = vpop.f32.mrf.mxu0
      %v455 = vadd.f32 0.0, %v454
      %v456 = vpop.f32.mrf.mxu0
      %457 = vmatprep.mubr.f32.mxu0 0.0
      %458 = vmatmul.mubr.f32.gmra.mxu0 %v187
      %v459 = vpop.f32.mrf.mxu0
      %v460 = vadd.f32 0.0, %v459
      %v461 = vpop.f32.mrf.mxu0
      %462 = vdwg.mxu0
      %v463 = vadd.f32 %v363, %v455
      %v464 = vadd.f32 %v368, %v460
      %v465 = vadd.f32 %v463, %v464
      %v466 = vrot.slane %v465, 4
      %v467 = vadd.f32 %v465, %v466
      %v468 = vrot.slane %v467, 2
      %v469 = vadd.f32 %v467, %v468
      %v470 = vrot.slane %v469, 1
      %v471 = vadd.f32 %v469, %v470
      %472 = vst [vmem:[%s181] sm:$0x1] %v471
      %v473 = vmul.f32 %v463, %v463
      %v474 = vmul.f32 %v464, %v464
      %v475 = vadd.f32 %v473, %v474
      %v476 = vrot.slane %v475, 4
      %v477 = vadd.f32 %v475, %v476
      %v478 = vrot.slane %v477, 2
      %v479 = vadd.f32 %v477, %v478
      %v480 = vrot.slane %v479, 1
      %v481 = vadd.f32 %v479, %v480
      %482 = vst [vmem:[%s181 + $0x1] sm:$0x1] %v481
      %483 = vst [vmem:[%s177] sm:$0x1] 0.0
      %484 = vst [vmem:[%s177 + $0x1] sm:$0xff] %v463
      %485 = vst [vmem:[%s177 + $0x9] sm:$0xff] %v464
      %486 = vst [vmem:[%s177 + $0x11] sm:$0x1] 0.0
      %p487 = scmp.lt.s32.totalorder %s15, 1
      %s488 = scalar_select %p487, %s15, 1
      %s489 = smul.addr %s488, 3
      %s490 = smul.addr %s489, 8
      %s491 = scalar_lea.vmem %s2, %s490
      %p492 = scmp.lt.s32.totalorder %s15, 1
      %s493 = scalar_select %p492, %s15, 1
      %s494 = smul.addr %s493, 2
      %s495 = scalar_lea.vmem %s3, %s494
      // Predicated region
      $region29: #{basic_block.3} parent=27 // pred_check
        %p496 = pneg %p80
      $region30: #{basic_block.3} parent=27 // pred_check_branch
        %498 = sbr.rel (%p496) target = $region32
      $region31: #{basic_block.3} parent=27 // pred_region
        _
      $region32: #{basic_block.3} parent=27 // pred_fallthru
        _
      // Predicated region
      $region33: #{basic_block.3} parent=27 // pred_check
        %p499 = pneg %p106
      $region34: #{basic_block.3} parent=27 // pred_check_branch
        %501 = sbr.rel (%p499) target = $region36
      $region35: #{basic_block.3} parent=27 // pred_region
        _
      $region36: #{basic_block.3} parent=27 // pred_fallthru
        _
    $region28: #{basic_block.3} parent=5 // pred_fallthru
      _
    %p502 = scmp.le.s32.totalorder 2, %s10
    // Predicated region
    $region37: #{basic_block.3} parent=5 // pred_check
      %p503 = pneg %p502
    $region38: #{basic_block.3} parent=5 // pred_check_branch
      %505 = sbr.rel (%p503) target = $region40
    $region39: #{basic_block.3} parent=5 // pred_region
      %s506 = ssub.s32 %s10, 2
      // Predicated region
      $region41: #{basic_block.3} parent=39 // pred_check
        %p507 = pneg %p86
      $region42: #{basic_block.3} parent=39 // pred_check_branch
        %509 = sbr.rel (%p507) target = $region44
      $region43: #{basic_block.3} parent=39 // pred_region
        %p510 = scmp.lt.s32.totalorder %s16, 1
        %s511 = scalar_select %p510, %s16, 1
        %s512 = smul.addr %s511, 3
        %s513 = smul.addr %s512, 8
        %s514 = scalar_lea.vmem %s2, %s513
      $region44: #{basic_block.3} parent=39 // pred_fallthru
        _
      // Predicated region
      $region45: #{basic_block.3} parent=39 // pred_check
        %p515 = pneg %p112
      $region46: #{basic_block.3} parent=39 // pred_check_branch
        %517 = sbr.rel (%p515) target = $region48
      $region47: #{basic_block.3} parent=39 // pred_region
        %p518 = scmp.lt.s32.totalorder %s16, 1
        %s519 = scalar_select %p518, %s16, 1
        %s520 = smul.addr %s519, 2
        %s521 = scalar_lea.vmem %s3, %s520
      $region48: #{basic_block.3} parent=39 // pred_fallthru
        _
    $region40: #{basic_block.3} parent=5 // pred_fallthru
      _
  $region6: #{basic_block.3} parent=0 // loop_footer
    %s14 = sadd.s32 1, %s10
  $region7: #{basic_block.3} parent=0 // loop_footer_branch
    %9 = sbr.rel target = $region3
  $region8: #{basic_block.3} parent=0 // loop_exit
    _

// kernel: basic_block.4
$region0: #{basic_block.4}
  #allocation0 [shape = 'u32[]', space=smem, size = 0x4, offset = 0x4, fixed_abs, tag = 'smem constant byte address 0x4 - core index']
  #allocation1 [shape = 'u32[144,128]{1,0:T(1,128)}', space=vmem, size = 0x12000, scoped, tag = 'internal scratch']
  %s0 = inlined_call_operand.vmem [shape: f32[2,18,128], index: 0, kind: input, shape index: {}]
  %s1 = inlined_call_operand.vmem [shape: f32[2,128], index: 1, kind: input, shape index: {}]
  %s2 = inlined_call_operand.vmem [shape: f32[3,128,128], index: 2, kind: input, shape index: {}]
  %s3 = inlined_call_operand.vmem [shape: f32[2,16,128], index: 3, kind: output, shape index: {0}]
  %s4 = inlined_call_operand.vmem [shape: f32[2,2,128], index: 4, kind: output, shape index: {1}]
  %5 = xla_tuple %s3, %s4
  %s6 = sld [smem:[#allocation0]]
  $region53: #{basic_block.4} parent=0
    _
  %s8 = ssub.s32 1, %s6
  %s9 = scalar_select 0, %s8, %s6
  loop: start=0, step=1, limit=4
  $region2: #{basic_block.4} parent=0 // loop_pre_header
    _
  $region3: #{basic_block.4} parent=0 // loop_header
    %s11 = sphi 0, %s15
    %p12 = scmp.ge.s32.totalorder %s11, 4
    %s21 = sphi 0, %s23
    %s24 = sphi 0, %s21
    %s25 = sphi 0, %s24
    %s41 = sphi 0, %s25
    %s45 = sphi 0, %s45
    %s47 = sphi 0, %s45
    %s48 = sphi 0, %s47
    %s62 = sphi 0, %s48
    %s66 = sphi 0, %s66
    %s68 = sphi 0, %s66
    %s69 = sphi 0, %s68
    %s83 = sphi 0, %s69
    %s89 = sphi 0, %s91
    %s92 = sphi 0, %s89
    %s93 = sphi 0, %s92
    %s109 = sphi 0, %s93
    %s115 = sphi 0, %s117
    %s118 = sphi 0, %s115
    %s119 = sphi 0, %s118
    %s135 = sphi 0, %s119
  $region4: #{basic_block.4} parent=0 // loop_header_branch
    %14 = sbr.rel (%p12) target = $region8
  $region5: #{basic_block.4} parent=0 // loop_body
    %s16 = ssub.s32 %s11, 1
    %s17 = ssub.s32 %s11, 2
    %s18 = sadd.s32 %s11, 1
    %s19 = ssub.s32 %s11, %s18
    %p20 = scmp.eq.s32.totalorder %s19, 0
    %s22 = sadd.s32 %s21, 1
    %s23 = scalar_select %p20, %s21, %s22
    %p26 = pneg %p20
    %p27 = scmp.eq.s32.totalorder %s11, 1
    %p28 = por %p26, %p27
    %p29 = scmp.ne.s32.totalorder %s21, %s24
    %p30 = scmp.eq.s32.totalorder %s11, 0
    %p31 = por %p29, %p30
    %p32 = scmp.ne.s32.totalorder %s21, %s24
    %p33 = scmp.eq.s32.totalorder %s16, 1
    %p34 = por %p32, %p33
    %p35 = scmp.ne.s32.totalorder %s24, %s25
    %p36 = scmp.eq.s32.totalorder %s16, 0
    %p37 = por %p35, %p36
    %p38 = scmp.ne.s32.totalorder %s24, %s25
    %p39 = scmp.eq.s32.totalorder %s17, 1
    %p40 = por %p38, %p39
    %p42 = scmp.ne.s32.totalorder %s25, %s41
    %p43 = scmp.eq.s32.totalorder %s17, 0
    %p44 = por %p42, %p43
    %s46 = sadd.s32 %s45, 1
    %p49 = scmp.eq.s32.totalorder %s11, 1
    %p50 = scmp.ne.s32.totalorder %s45, %s47
    %p51 = scmp.eq.s32.totalorder %s11, 0
    %p52 = por %p50, %p51
    %p53 = scmp.ne.s32.totalorder %s45, %s47
    %p54 = scmp.eq.s32.totalorder %s16, 1
    %p55 = por %p53, %p54
    %p56 = scmp.ne.s32.totalorder %s47, %s48
    %p57 = scmp.eq.s32.totalorder %s16, 0
    %p58 = por %p56, %p57
    %p59 = scmp.ne.s32.totalorder %s47, %s48
    %p60 = scmp.eq.s32.totalorder %s17, 1
    %p61 = por %p59, %p60
    %p63 = scmp.ne.s32.totalorder %s48, %s62
    %p64 = scmp.eq.s32.totalorder %s17, 0
    %p65 = por %p63, %p64
    %s67 = sadd.s32 %s66, 1
    %p70 = scmp.eq.s32.totalorder %s11, 1
    %p71 = scmp.ne.s32.totalorder %s66, %s68
    %p72 = scmp.eq.s32.totalorder %s11, 0
    %p73 = por %p71, %p72
    %p74 = scmp.ne.s32.totalorder %s66, %s68
    %p75 = scmp.eq.s32.totalorder %s16, 1
    %p76 = por %p74, %p75
    %p77 = scmp.ne.s32.totalorder %s68, %s69
    %p78 = scmp.eq.s32.totalorder %s16, 0
    %p79 = por %p77, %p78
    %p80 = scmp.ne.s32.totalorder %s68, %s69
    %p81 = scmp.eq.s32.totalorder %s17, 1
    %p82 = por %p80, %p81
    %p84 = scmp.ne.s32.totalorder %s69, %s83
    %p85 = scmp.eq.s32.totalorder %s17, 0
    %p86 = por %p84, %p85
    %s87 = ssub.s32 %s11, %s18
    %p88 = scmp.eq.s32.totalorder %s87, 0
    %s90 = sadd.s32 %s89, 1
    %s91 = scalar_select %p88, %s89, %s90
    %p94 = pneg %p88
    %p95 = scmp.eq.s32.totalorder %s11, 1
    %p96 = por %p94, %p95
    %p97 = scmp.ne.s32.totalorder %s89, %s92
    %p98 = scmp.eq.s32.totalorder %s11, 0
    %p99 = por %p97, %p98
    %p100 = scmp.ne.s32.totalorder %s89, %s92
    %p101 = scmp.eq.s32.totalorder %s16, 1
    %p102 = por %p100, %p101
    %p103 = scmp.ne.s32.totalorder %s92, %s93
    %p104 = scmp.eq.s32.totalorder %s16, 0
    %p105 = por %p103, %p104
    %p106 = scmp.ne.s32.totalorder %s92, %s93
    %p107 = scmp.eq.s32.totalorder %s17, 1
    %p108 = por %p106, %p107
    %p110 = scmp.ne.s32.totalorder %s93, %s109
    %p111 = scmp.eq.s32.totalorder %s17, 0
    %p112 = por %p110, %p111
    %s113 = ssub.s32 %s11, %s18
    %p114 = scmp.eq.s32.totalorder %s113, 0
    %s116 = sadd.s32 %s115, 1
    %s117 = scalar_select %p114, %s115, %s116
    %p120 = pneg %p114
    %p121 = scmp.eq.s32.totalorder %s11, 1
    %p122 = por %p120, %p121
    %p123 = scmp.ne.s32.totalorder %s115, %s118
    %p124 = scmp.eq.s32.totalorder %s11, 0
    %p125 = por %p123, %p124
    %p126 = scmp.ne.s32.totalorder %s115, %s118
    %p127 = scmp.eq.s32.totalorder %s16, 1
    %p128 = por %p126, %p127
    %p129 = scmp.ne.s32.totalorder %s118, %s119
    %p130 = scmp.eq.s32.totalorder %s16, 0
    %p131 = por %p129, %p130
    %p132 = scmp.ne.s32.totalorder %s118, %s119
    %p133 = scmp.eq.s32.totalorder %s17, 1
    %p134 = por %p132, %p133
    %p136 = scmp.ne.s32.totalorder %s119, %s135
    %p137 = scmp.eq.s32.totalorder %s17, 0
    %p138 = por %p136, %p137
    %p139 = scmp.le.s32.totalorder 1, %s11
    %p140 = scmp.lt.s32.totalorder %s11, 3
    %p141 = pnand %p139, %p140
    %p142 = pneg %p141
    // Predicated region
    $region9: #{basic_block.4} parent=5 // pred_check
      _
    $region10: #{basic_block.4} parent=5 // pred_check_branch
      %144 = sbr.rel (%p141) target = $region12
    $region11: #{basic_block.4} parent=5 // pred_region
      %s145 = ssub.s32 %s11, 1
      // Predicated region
      $region13: #{basic_block.4} parent=11 // pred_check
        %p146 = pneg %p58
      $region14: #{basic_block.4} parent=11 // pred_check_branch
        %148 = sbr.rel (%p146) target = $region16
      $region15: #{basic_block.4} parent=11 // pred_region
        _
      $region16: #{basic_block.4} parent=11 // pred_fallthru
        _
      // Predicated region
      $region17: #{basic_block.4} parent=11 // pred_check
        %p149 = pneg %p79
      $region18: #{basic_block.4} parent=11 // pred_check_branch
        %151 = sbr.rel (%p149) target = $region20
      $region19: #{basic_block.4} parent=11 // pred_region
        _
      $region20: #{basic_block.4} parent=11 // pred_fallthru
        _
    $region12: #{basic_block.4} parent=5 // pred_fallthru
      _
    %p152 = scmp.lt.s32.totalorder %s11, 2
    // Predicated region
    $region21: #{basic_block.4} parent=5 // pred_check
      %p153 = pneg %p152
    $region22: #{basic_block.4} parent=5 // pred_check_branch
      %155 = sbr.rel (%p153) target = $region24
    $region23: #{basic_block.4} parent=5 // pred_region
      // Predicated region
      $region25: #{basic_block.4} parent=23 // pred_check
        %p156 = pneg %p31
      $region26: #{basic_block.4} parent=23 // pred_check_branch
        %158 = sbr.rel (%p156) target = $region28
      $region27: #{basic_block.4} parent=23 // pred_region
        %p159 = scmp.lt.s32.totalorder %s11, 1
        %s160 = scalar_select %p159, %s11, 1
        %s161 = smul.addr %s160, 3
        %s162 = smul.addr %s161, 8
        %s163 = scalar_lea.vmem %s0, %s162
      $region28: #{basic_block.4} parent=23 // pred_fallthru
        _
    $region24: #{basic_block.4} parent=5 // pred_fallthru
      _
    %p164 = scmp.le.s32.totalorder 1, %s11
    %p165 = scmp.lt.s32.totalorder %s11, 3
    %p166 = pnand %p164, %p165
    %p167 = pneg %p166
    // Predicated region
    $region29: #{basic_block.4} parent=5 // pred_check
      _
    $region30: #{basic_block.4} parent=5 // pred_check_branch
      %169 = sbr.rel (%p166) target = $region32
    $region31: #{basic_block.4} parent=5 // pred_region
      %s170 = ssub.s32 %s11, 1
      %p171 = scmp.lt.s32.totalorder %s16, 1
      %s172 = scalar_select %p171, %s16, 1
      %s173 = smul.addr %s172, 3
      %s174 = smul.addr %s173, 8
      %s175 = scalar_lea.vmem %s0, %s174
      %p176 = pneg %p37
      %p177 = pneg %p34
      %p178 = pneg %p58
      %p179 = pneg %p55
      %p180 = pneg %p79
      %p181 = pneg %p76
      %p182 = pneg %p105
      %p183 = pneg %p102
      %p184 = scmp.lt.s32.totalorder %s16, 1
      %s185 = scalar_select %p184, %s16, 1
      %s186 = smul.addr %s185, 2
      %s187 = smul.addr %s186, 8
      %s188 = scalar_lea.vmem %s3, %s187
      %p189 = pneg %p131
      %p190 = pneg %p128
      %p191 = scmp.lt.s32.totalorder %s16, 1
      %s192 = scalar_select %p191, %s16, 1
      %s193 = smul.addr %s192, 2
      %s194 = scalar_lea.vmem %s4, %s193
      %p195 = scmp.lt.s32.totalorder %s16, 1
      %s196 = scalar_select %p195, %s16, 1
      %s197 = smul.addr %s196, 3
      %s198 = smul.addr %s197, 8
      %s199 = scalar_lea.vmem %s0, %s198
      %p200 = scmp.lt.s32.totalorder %s16, 1
      %s201 = scalar_select %p200, %s16, 1
      %s202 = smul.addr %s201, 2
      %s203 = smul.addr %s202, 8
      %s204 = scalar_lea.vmem %s3, %s203
      %p205 = scmp.lt.s32.totalorder %s16, 1
      %s206 = scalar_select %p205, %s16, 1
      %s207 = smul.addr %s206, 2
      %s208 = scalar_lea.vmem %s4, %s207
      %v209 = vld [vmem:[%s1] sm:$0x1]
      %v210 = vld [vmem:[%s1 + $0x1] sm:$0x1]
      %v211 = vld [vmem:[%s199] sm:$0xff]
      %v212 = vld [vmem:[%s199 + $0x8] sm:$0xff]
      %v213 = vld [vmem:[%s199 + $0x10] sm:$0x3]
      %v214 = vlaneseq
      %v215 = vshrl.u32 %v214, 7
      %v216 = vsub.s32 0, %v215
      %v217 = vrot.slane %v209, %v216
      %v218 = vmul.f32 %v211, %v217
      %v219 = vmul.f32 %v212, %v217
      %v220 = vmul.f32 %v213, %v217
      %v221 = vlaneseq
      %v222 = vshrl.u32 %v221, 7
      %v223 = vsub.s32 0, %v222
      %v224 = vrot.slane %v210, %v223
      %v225 = vadd.f32 %v218, %v224
      %v226 = vadd.f32 %v219, %v224
      %v227 = vadd.f32 %v220, %v224
      %v228 = vmax.f32 %v225, 0.0
      %v229 = vmax.f32 %v226, 0.0
      %v230 = vmax.f32 %v227, 0.0
      %v231 = vlaneseq
      %v232 = vshrl.u32 %v231, 7
      %v233 = vadd.s32 %v232, 8
      %v234 = vadd.s32 %v232, 16
      %vm235 = vcmp.ge.s32.totalorder %v232, 1
      %vm236 = vcmp.ge.s32.totalorder %v233, 1
      %vm237 = vcmp.ge.s32.totalorder %v234, 1
      %vm238 = vcmp.le.s32.totalorder %v232, 16
      %vm239 = vcmp.le.s32.totalorder %v233, 16
      %vm240 = vcmp.le.s32.totalorder %v234, 16
      %vm241 = vmand %vm235, %vm238
      %vm242 = vmand %vm236, %vm239
      %vm243 = vmand %vm237, %vm240
      %v244 = vsel %vm241, 1, 0
      %v245 = vsel %vm242, 1, 0
      %v246 = vsel %vm243, 1, 0
      %vm247 = vcmp.eq.s32.totalorder %v244, 1
      %vm248 = vcmp.eq.s32.totalorder %v245, 1
      %vm249 = vcmp.eq.s32.totalorder %v246, 1
      %v250 = vsel %vm247, %v228, 0.0
      %v251 = vsel %vm248, %v229, 0.0
      %v252 = vsel %vm249, %v230, 0.0
      %v253 = vld [vmem:[%s2] sm:$0xff]
      %v254 = vld [vmem:[%s2 + $0x8] sm:$0xff]
      %v255 = vld [vmem:[%s2 + $0x10] sm:$0xff]
      %v256 = vld [vmem:[%s2 + $0x18] sm:$0xff]
      %v257 = vld [vmem:[%s2 + $0x20] sm:$0xff]
      %v258 = vld [vmem:[%s2 + $0x28] sm:$0xff]
      %v259 = vld [vmem:[%s2 + $0x30] sm:$0xff]
      %v260 = vld [vmem:[%s2 + $0x38] sm:$0xff]
      %v261 = vld [vmem:[%s2 + $0x40] sm:$0xff]
      %v262 = vld [vmem:[%s2 + $0x48] sm:$0xff]
      %v263 = vld [vmem:[%s2 + $0x50] sm:$0xff]
      %v264 = vld [vmem:[%s2 + $0x58] sm:$0xff]
      %v265 = vld [vmem:[%s2 + $0x60] sm:$0xff]
      %v266 = vld [vmem:[%s2 + $0x68] sm:$0xff]
      %v267 = vld [vmem:[%s2 + $0x70] sm:$0xff]
      %v268 = vld [vmem:[%s2 + $0x78] sm:$0xff]
      %s269 = scalar_lea.vmem %s2, 128
      %v270 = vld [vmem:[%s269] sm:$0xff]
      %v271 = vld [vmem:[%s269 + $0x8] sm:$0xff]
      %v272 = vld [vmem:[%s269 + $0x10] sm:$0xff]
      %v273 = vld [vmem:[%s269 + $0x18] sm:$0xff]
      %v274 = vld [vmem:[%s269 + $0x20] sm:$0xff]
      %v275 = vld [vmem:[%s269 + $0x28] sm:$0xff]
      %v276 = vld [vmem:[%s269 + $0x30] sm:$0xff]
      %v277 = vld [vmem:[%s269 + $0x38] sm:$0xff]
      %v278 = vld [vmem:[%s269 + $0x40] sm:$0xff]
      %v279 = vld [vmem:[%s269 + $0x48] sm:$0xff]
      %v280 = vld [vmem:[%s269 + $0x50] sm:$0xff]
      %v281 = vld [vmem:[%s269 + $0x58] sm:$0xff]
      %v282 = vld [vmem:[%s269 + $0x60] sm:$0xff]
      %v283 = vld [vmem:[%s269 + $0x68] sm:$0xff]
      %v284 = vld [vmem:[%s269 + $0x70] sm:$0xff]
      %v285 = vld [vmem:[%s269 + $0x78] sm:$0xff]
      %vm289 = vcmask 1046528
      %v290 = vrot.slane %v250, 1
      %v291 = vrot.slane %v251, 1
      %v292 = vsel %vm289, %v290, %v291
      %v293 = vrot.slane %v252, 1
      %v294 = vsel %vm289, %v291, %v293
      %297 = vmatprep.subr.mxu0 0.0
      %298 = vmatpush1.msra.mxu0 %v285
      %299 = vmatprep.subr.mxu0 0.0
      %300 = vmatpush1.msra.mxu0 %v284
      %301 = vmatprep.subr.mxu0 0.0
      %302 = vmatpush1.msra.mxu0 %v283
      %303 = vmatprep.subr.mxu0 0.0
      %304 = vmatpush1.msra.mxu0 %v282
      %305 = vmatprep.subr.mxu0 0.0
      %306 = vmatpush1.msra.mxu0 %v281
      %307 = vmatprep.subr.mxu0 0.0
      %308 = vmatpush1.msra.mxu0 %v280
      %309 = vmatprep.subr.mxu0 0.0
      %310 = vmatpush1.msra.mxu0 %v279
      %311 = vmatprep.subr.mxu0 0.0
      %312 = vmatpush1.msra.mxu0 %v278
      %313 = vmatprep.subr.mxu0 0.0
      %314 = vmatpush1.msra.mxu0 %v277
      %315 = vmatprep.subr.mxu0 0.0
      %316 = vmatpush1.msra.mxu0 %v276
      %317 = vmatprep.subr.mxu0 0.0
      %318 = vmatpush1.msra.mxu0 %v275
      %319 = vmatprep.subr.mxu0 0.0
      %320 = vmatpush1.msra.mxu0 %v274
      %321 = vmatprep.subr.mxu0 0.0
      %322 = vmatpush1.msra.mxu0 %v273
      %323 = vmatprep.subr.mxu0 0.0
      %324 = vmatpush1.msra.mxu0 %v272
      %325 = vmatprep.subr.mxu0 0.0
      %326 = vmatpush1.msra.mxu0 %v271
      %327 = vmatprep.subr.mxu0 0.0
      %328 = vmatpush1.msra.mxu0 %v270
      %329 = vmatprep.subr.mxu0 0.0
      %330 = vmatpush2.msra.mxu0 0.0
      %331 = vmatprep.subr.mxu0 0.0
      %332 = vmatpush2.msra.mxu0 0.0
      %333 = vmatprep.subr.mxu0 0.0
      %334 = vmatpush2.msra.mxu0 0.0
      %335 = vmatprep.subr.mxu0 0.0
      %336 = vmatpush2.msra.mxu0 0.0
      %337 = vmatprep.subr.mxu0 0.0
      %338 = vmatpush2.msra.mxu0 0.0
      %339 = vmatprep.subr.mxu0 0.0
      %340 = vmatpush2.msra.mxu0 0.0
      %341 = vmatprep.subr.mxu0 0.0
      %342 = vmatpush2.msra.mxu0 0.0
      %343 = vmatprep.subr.mxu0 0.0
      %344 = vmatpush2.msra.mxu0 0.0
      %345 = vmatprep.subr.mxu0 0.0
      %346 = vmatpush2.msra.mxu0 0.0
      %347 = vmatprep.subr.mxu0 0.0
      %348 = vmatpush2.msra.mxu0 0.0
      %349 = vmatprep.subr.mxu0 0.0
      %350 = vmatpush2.msra.mxu0 0.0
      %351 = vmatprep.subr.mxu0 0.0
      %352 = vmatpush2.msra.mxu0 0.0
      %353 = vmatprep.subr.mxu0 0.0
      %354 = vmatpush2.msra.mxu0 0.0
      %355 = vmatprep.subr.mxu0 0.0
      %356 = vmatpush2.msra.mxu0 0.0
      %357 = vmatprep.subr.mxu0 0.0
      %358 = vmatpush2.msra.mxu0 0.0
      %359 = vmatprep.subr.mxu0 0.0
      %360 = vmatpush2.msra.mxu0 0.0
      %361 = vmatprep.mubr.f32.mxu0 0.0
      %362 = vmatmul.mubr.f32.gmra.mxu0 %v292
      %v363 = vpop.f32.mrf.mxu0
      %v364 = vadd.f32 0.0, %v363
      %v365 = vpop.f32.mrf.mxu0
      %366 = vmatprep.mubr.f32.mxu0 0.0
      %367 = vmatmul.mubr.f32.gmra.mxu0 %v294
      %v368 = vpop.f32.mrf.mxu0
      %v369 = vadd.f32 0.0, %v368
      %v370 = vpop.f32.mrf.mxu0
      %371 = vdwg.mxu0
      %372 = vmatprep.subr.mxu0 0.0
      %373 = vmatpush1.msra.mxu0 %v268
      %374 = vmatprep.subr.mxu0 0.0
      %375 = vmatpush1.msra.mxu0 %v267
      %376 = vmatprep.subr.mxu0 0.0
      %377 = vmatpush1.msra.mxu0 %v266
      %378 = vmatprep.subr.mxu0 0.0
      %379 = vmatpush1.msra.mxu0 %v265
      %380 = vmatprep.subr.mxu0 0.0
      %381 = vmatpush1.msra.mxu0 %v264
      %382 = vmatprep.subr.mxu0 0.0
      %383 = vmatpush1.msra.mxu0 %v263
      %384 = vmatprep.subr.mxu0 0.0
      %385 = vmatpush1.msra.mxu0 %v262
      %386 = vmatprep.subr.mxu0 0.0
      %387 = vmatpush1.msra.mxu0 %v261
      %388 = vmatprep.subr.mxu0 0.0
      %389 = vmatpush1.msra.mxu0 %v260
      %390 = vmatprep.subr.mxu0 0.0
      %391 = vmatpush1.msra.mxu0 %v259
      %392 = vmatprep.subr.mxu0 0.0
      %393 = vmatpush1.msra.mxu0 %v258
      %394 = vmatprep.subr.mxu0 0.0
      %395 = vmatpush1.msra.mxu0 %v257
      %396 = vmatprep.subr.mxu0 0.0
      %397 = vmatpush1.msra.mxu0 %v256
      %398 = vmatprep.subr.mxu0 0.0
      %399 = vmatpush1.msra.mxu0 %v255
      %400 = vmatprep.subr.mxu0 0.0
      %401 = vmatpush1.msra.mxu0 %v254
      %402 = vmatprep.subr.mxu0 0.0
      %403 = vmatpush1.msra.mxu0 %v253
      %404 = vmatprep.subr.mxu0 0.0
      %405 = vmatpush2.msra.mxu0 0.0
      %406 = vmatprep.subr.mxu0 0.0
      %407 = vmatpush2.msra.mxu0 0.0
      %408 = vmatprep.subr.mxu0 0.0
      %409 = vmatpush2.msra.mxu0 0.0
      %410 = vmatprep.subr.mxu0 0.0
      %411 = vmatpush2.msra.mxu0 0.0
      %412 = vmatprep.subr.mxu0 0.0
      %413 = vmatpush2.msra.mxu0 0.0
      %414 = vmatprep.subr.mxu0 0.0
      %415 = vmatpush2.msra.mxu0 0.0
      %416 = vmatprep.subr.mxu0 0.0
      %417 = vmatpush2.msra.mxu0 0.0
      %418 = vmatprep.subr.mxu0 0.0
      %419 = vmatpush2.msra.mxu0 0.0
      %420 = vmatprep.subr.mxu0 0.0
      %421 = vmatpush2.msra.mxu0 0.0
      %422 = vmatprep.subr.mxu0 0.0
      %423 = vmatpush2.msra.mxu0 0.0
      %424 = vmatprep.subr.mxu0 0.0
      %425 = vmatpush2.msra.mxu0 0.0
      %426 = vmatprep.subr.mxu0 0.0
      %427 = vmatpush2.msra.mxu0 0.0
      %428 = vmatprep.subr.mxu0 0.0
      %429 = vmatpush2.msra.mxu0 0.0
      %430 = vmatprep.subr.mxu0 0.0
      %431 = vmatpush2.msra.mxu0 0.0
      %432 = vmatprep.subr.mxu0 0.0
      %433 = vmatpush2.msra.mxu0 0.0
      %434 = vmatprep.subr.mxu0 0.0
      %435 = vmatpush2.msra.mxu0 0.0
      %436 = vmatprep.mubr.f32.mxu0 0.0
      %437 = vmatmul.mubr.f32.gmra.mxu0 %v250
      %v438 = vpop.f32.mrf.mxu0
      %v439 = vadd.f32 %v364, %v438
      %v440 = vpop.f32.mrf.mxu0
      %441 = vmatprep.mubr.f32.mxu0 0.0
      %442 = vmatmul.mubr.f32.gmra.mxu0 %v251
      %v443 = vpop.f32.mrf.mxu0
      %v444 = vadd.f32 %v369, %v443
      %v445 = vpop.f32.mrf.mxu0
      %446 = vdwg.mxu0
      %s447 = scalar_lea.vmem %s2, 256
      %v448 = vld [vmem:[%s447] sm:$0xff]
      %v449 = vld [vmem:[%s447 + $0x8] sm:$0xff]
      %v450 = vld [vmem:[%s447 + $0x10] sm:$0xff]
      %v451 = vld [vmem:[%s447 + $0x18] sm:$0xff]
      %v452 = vld [vmem:[%s447 + $0x20] sm:$0xff]
      %v453 = vld [vmem:[%s447 + $0x28] sm:$0xff]
      %v454 = vld [vmem:[%s447 + $0x30] sm:$0xff]
      %v455 = vld [vmem:[%s447 + $0x38] sm:$0xff]
      %v456 = vld [vmem:[%s447 + $0x40] sm:$0xff]
      %v457 = vld [vmem:[%s447 + $0x48] sm:$0xff]
      %v458 = vld [vmem:[%s447 + $0x50] sm:$0xff]
      %v459 = vld [vmem:[%s447 + $0x58] sm:$0xff]
      %v460 = vld [vmem:[%s447 + $0x60] sm:$0xff]
      %v461 = vld [vmem:[%s447 + $0x68] sm:$0xff]
      %v462 = vld [vmem:[%s447 + $0x70] sm:$0xff]
      %v463 = vld [vmem:[%s447 + $0x78] sm:$0xff]
      %vm464 = vcmask 1045504
      %v465 = vrot.slane %v250, 2
      %v466 = vrot.slane %v251, 2
      %v467 = vsel %vm464, %v465, %v466
      %v468 = vrot.slane %v252, 2
      %v469 = vsel %vm464, %v466, %v468
      %472 = vmatprep.subr.mxu0 0.0
      %473 = vmatpush1.msra.mxu0 %v463
      %474 = vmatprep.subr.mxu0 0.0
      %475 = vmatpush1.msra.mxu0 %v462
      %476 = vmatprep.subr.mxu0 0.0
      %477 = vmatpush1.msra.mxu0 %v461
      %478 = vmatprep.subr.mxu0 0.0
      %479 = vmatpush1.msra.mxu0 %v460
      %480 = vmatprep.subr.mxu0 0.0
      %481 = vmatpush1.msra.mxu0 %v459
      %482 = vmatprep.subr.mxu0 0.0
      %483 = vmatpush1.msra.mxu0 %v458
      %484 = vmatprep.subr.mxu0 0.0
      %485 = vmatpush1.msra.mxu0 %v457
      %486 = vmatprep.subr.mxu0 0.0
      %487 = vmatpush1.msra.mxu0 %v456
      %488 = vmatprep.subr.mxu0 0.0
      %489 = vmatpush1.msra.mxu0 %v455
      %490 = vmatprep.subr.mxu0 0.0
      %491 = vmatpush1.msra.mxu0 %v454
      %492 = vmatprep.subr.mxu0 0.0
      %493 = vmatpush1.msra.mxu0 %v453
      %494 = vmatprep.subr.mxu0 0.0
      %495 = vmatpush1.msra.mxu0 %v452
      %496 = vmatprep.subr.mxu0 0.0
      %497 = vmatpush1.msra.mxu0 %v451
      %498 = vmatprep.subr.mxu0 0.0
      %499 = vmatpush1.msra.mxu0 %v450
      %500 = vmatprep.subr.mxu0 0.0
      %501 = vmatpush1.msra.mxu0 %v449
      %502 = vmatprep.subr.mxu0 0.0
      %503 = vmatpush1.msra.mxu0 %v448
      %504 = vmatprep.subr.mxu0 0.0
      %505 = vmatpush2.msra.mxu0 0.0
      %506 = vmatprep.subr.mxu0 0.0
      %507 = vmatpush2.msra.mxu0 0.0
      %508 = vmatprep.subr.mxu0 0.0
      %509 = vmatpush2.msra.mxu0 0.0
      %510 = vmatprep.subr.mxu0 0.0
      %511 = vmatpush2.msra.mxu0 0.0
      %512 = vmatprep.subr.mxu0 0.0
      %513 = vmatpush2.msra.mxu0 0.0
      %514 = vmatprep.subr.mxu0 0.0
      %515 = vmatpush2.msra.mxu0 0.0
      %516 = vmatprep.subr.mxu0 0.0
      %517 = vmatpush2.msra.mxu0 0.0
      %518 = vmatprep.subr.mxu0 0.0
      %519 = vmatpush2.msra.mxu0 0.0
      %520 = vmatprep.subr.mxu0 0.0
      %521 = vmatpush2.msra.mxu0 0.0
      %522 = vmatprep.subr.mxu0 0.0
      %523 = vmatpush2.msra.mxu0 0.0
      %524 = vmatprep.subr.mxu0 0.0
      %525 = vmatpush2.msra.mxu0 0.0
      %526 = vmatprep.subr.mxu0 0.0
      %527 = vmatpush2.msra.mxu0 0.0
      %528 = vmatprep.subr.mxu0 0.0
      %529 = vmatpush2.msra.mxu0 0.0
      %530 = vmatprep.subr.mxu0 0.0
      %531 = vmatpush2.msra.mxu0 0.0
      %532 = vmatprep.subr.mxu0 0.0
      %533 = vmatpush2.msra.mxu0 0.0
      %534 = vmatprep.subr.mxu0 0.0
      %535 = vmatpush2.msra.mxu0 0.0
      %536 = vmatprep.mubr.f32.mxu0 0.0
      %537 = vmatmul.mubr.f32.gmra.mxu0 %v467
      %v538 = vpop.f32.mrf.mxu0
      %v539 = vadd.f32 0.0, %v538
      %v540 = vpop.f32.mrf.mxu0
      %541 = vmatprep.mubr.f32.mxu0 0.0
      %542 = vmatmul.mubr.f32.gmra.mxu0 %v469
      %v543 = vpop.f32.mrf.mxu0
      %v544 = vadd.f32 0.0, %v543
      %v545 = vpop.f32.mrf.mxu0
      %546 = vdwg.mxu0
      %v547 = vadd.f32 %v439, %v539
      %v548 = vadd.f32 %v444, %v544
      %v549 = vadd.f32 %v547, %v548
      %v550 = vrot.slane %v549, 4
      %v551 = vadd.f32 %v549, %v550
      %v552 = vrot.slane %v551, 2
      %v553 = vadd.f32 %v551, %v552
      %v554 = vrot.slane %v553, 1
      %v555 = vadd.f32 %v553, %v554
      %556 = vst [vmem:[%s208] sm:$0x1] %v555
      %v557 = vmul.f32 %v547, %v547
      %v558 = vmul.f32 %v548, %v548
      %v559 = vadd.f32 %v557, %v558
      %v560 = vrot.slane %v559, 4
      %v561 = vadd.f32 %v559, %v560
      %v562 = vrot.slane %v561, 2
      %v563 = vadd.f32 %v561, %v562
      %v564 = vrot.slane %v563, 1
      %v565 = vadd.f32 %v563, %v564
      %566 = vst [vmem:[%s208 + $0x1] sm:$0x1] %v565
      %567 = vst [vmem:[%s204] sm:$0xff] %v547
      %568 = vst [vmem:[%s204 + $0x8] sm:$0xff] %v548
      %p569 = scmp.lt.s32.totalorder %s16, 1
      %s570 = scalar_select %p569, %s16, 1
      %s571 = smul.addr %s570, 2
      %s572 = smul.addr %s571, 8
      %s573 = scalar_lea.vmem %s3, %s572
      %p574 = scmp.lt.s32.totalorder %s16, 1
      %s575 = scalar_select %p574, %s16, 1
      %s576 = smul.addr %s575, 2
      %s577 = scalar_lea.vmem %s4, %s576
      // Predicated region
      $region33: #{basic_block.4} parent=31 // pred_check
        %p578 = pneg %p102
      $region34: #{basic_block.4} parent=31 // pred_check_branch
        %580 = sbr.rel (%p578) target = $region36
      $region35: #{basic_block.4} parent=31 // pred_region
        _
      $region36: #{basic_block.4} parent=31 // pred_fallthru
        _
      // Predicated region
      $region37: #{basic_block.4} parent=31 // pred_check
        %p581 = pneg %p128
      $region38: #{basic_block.4} parent=31 // pred_check_branch
        %583 = sbr.rel (%p581) target = $region40
      $region39: #{basic_block.4} parent=31 // pred_region
        _
      $region40: #{basic_block.4} parent=31 // pred_fallthru
        _
    $region32: #{basic_block.4} parent=5 // pred_fallthru
      _
    %p584 = scmp.le.s32.totalorder 2, %s11
    // Predicated region
    $region41: #{basic_block.4} parent=5 // pred_check
      %p585 = pneg %p584
    $region42: #{basic_block.4} parent=5 // pred_check_branch
      %587 = sbr.rel (%p585) target = $region44
    $region43: #{basic_block.4} parent=5 // pred_region
      %s588 = ssub.s32 %s11, 2
      // Predicated region
      $region45: #{basic_block.4} parent=43 // pred_check
        %p589 = pneg %p108
      $region46: #{basic_block.4} parent=43 // pred_check_branch
        %591 = sbr.rel (%p589) target = $region48
      $region47: #{basic_block.4} parent=43 // pred_region
        %p592 = scmp.lt.s32.totalorder %s17, 1
        %s593 = scalar_select %p592, %s17, 1
        %s594 = smul.addr %s593, 2
        %s595 = smul.addr %s594, 8
        %s596 = scalar_lea.vmem %s3, %s595
      $region48: #{basic_block.4} parent=43 // pred_fallthru
        _
      // Predicated region
      $region49: #{basic_block.4} parent=43 // pred_check
        %p597 = pneg %p134
      $region50: #{basic_block.4} parent=43 // pred_check_branch
        %599 = sbr.rel (%p597) target = $region52
      $region51: #{basic_block.4} parent=43 // pred_region
        %p600 = scmp.lt.s32.totalorder %s17, 1
        %s601 = scalar_select %p600, %s17, 1
        %s602 = smul.addr %s601, 2
        %s603 = scalar_lea.vmem %s4, %s602
      $region52: #{basic_block.4} parent=43 // pred_fallthru
        _
    $region44: #{basic_block.4} parent=5 // pred_fallthru
      _
  $region6: #{basic_block.4} parent=0 // loop_footer
    %s15 = sadd.s32 1, %s11
  $region7: #{basic_block.4} parent=0 // loop_footer_branch
    %10 = sbr.rel target = $region3
  $region8: #{basic_block.4} parent=0 // loop_exit
    _

</llo_original>
